<compile_context>
chip_gen: v7x
topology: tpu7x:2x2x1
jax: 0.10.0
libtpu: 0.0.40
codegen_flags: <defaults>
</compile_context>

<pallas_src>
import math
import numpy as np
import jax
import jax.numpy as jnp
from jax.experimental import pallas as pl
from jax.experimental.pallas import tpu as pltpu

EPS = 1e-5
NCLS_PAD = 128  # padded class dimension


def gao_kernel(xpt_ref, w0t_ref, w1t_ref, w11t_ref, w12t_ref,
               w13at_ref, w13bt_ref, w14t_ref,
               wfxt_ref, wfd1t_ref, wfd2t_ref,
               pw_ref, fcwt_ref, fcbt_ref, out_ref):
    f32 = jnp.float32
    m = xpt_ref.shape[1]
    inv_m = 1.0 / float(m)

    def bn_relu(y):
        # y: (C, M). BatchNorm2d (train mode, gamma=1/beta=0, biased var) +
        # ReLU.  One-pass stats: sum and sum-of-squares over the lane axis.
        s = jnp.sum(y, axis=1, keepdims=True)
        sq = jnp.sum(y * y, axis=1, keepdims=True)
        mean = s * inv_m
        var = jnp.maximum(sq * inv_m - mean * mean, 0.0)
        return jnp.maximum((y - mean) * jax.lax.rsqrt(var + EPS), 0.0)

    def mm(a, b):
        return jnp.dot(a, b, preferred_element_type=f32)

    # conv0: 3x3 conv as im2col matmul (transposed), then BN + ReLU.
    x0 = bn_relu(mm(w0t_ref[...], xpt_ref[...]))        # (g,  M)
    x1 = bn_relu(mm(w1t_ref[...], x0))                  # (2g, M)  conv1
    d1 = bn_relu(mm(w11t_ref[...], x1))                 # conv1_1
    d1 = bn_relu(mm(w12t_ref[...], d1))                 # conv1_2
    # conv1_3 acts on cat(x1, d1): weight pre-split in the wrapper.
    d2 = bn_relu(mm(w13at_ref[...], x1) + mm(w13bt_ref[...], d1))
    d2 = bn_relu(mm(w14t_ref[...], d2))                 # conv1_4
    # final_conv acts on cat(x1, x1, d1, d2): the two x1 slabs were summed
    # offline, so only three matmuls remain.
    f = bn_relu(mm(wfxt_ref[...], x1)
                + mm(wfd1t_ref[...], d1)
                + mm(wfd2t_ref[...], d2))               # (2g, M)

    # avgpool(2,2)/2 composed with global_avgpool(3,3)/3 == per-image weighted
    # sum over pixels with the precomputed (Ho*Wo, 1) weight vector (no dense
    # N x M pooling matrix).
    n_img = out_ref.shape[1]
    hw = pw_ref.shape[0]
    cols = [mm(f[:, n * hw:(n + 1) * hw], pw_ref[...]) for n in range(n_img)]
    pooled = jnp.concatenate(cols, axis=1)              # (2g, N)

    # fc (transposed): logits^T = Wfc^T @ pooled + b^T  -> (128, N)
    out_ref[...] = mm(fcwt_ref[...], pooled) + fcbt_ref[...]


def _im2col_3x3_t(x_nhwc):
    """(N,H,W,C) -> (9*C, N*Ho*Wo); row index = (ky*3+kx)*C + c, matching
    w0.reshape(9*C, g)."""
    N, H, W, C = x_nhwc.shape
    Ho, Wo = H - 2, W - 2
    rows = []
    for ky in range(3):
        for kx in range(3):
            patch = x_nhwc[:, ky:ky + Ho, kx:kx + Wo, :]              # (N,Ho,Wo,C)
            rows.append(jnp.transpose(patch, (3, 0, 1, 2)).reshape(C, -1))
    return jnp.concatenate(rows, axis=0)


def _pool_weights(Ho, Wo):
    """Composition of AvgPool2d((2,2),2) then AvgPool2d(3,3) (both floor) as a
    per-pixel weight vector, shape (Ho*Wo, 1)."""
    Ho2, Wo2 = Ho // 2, Wo // 2
    assert Ho2 // 3 == 1 and Wo2 // 3 == 1, "fc expects a 1x1 map after pooling"
    pw = np.zeros((Ho, Wo), np.float32)
    for i in range(Ho2 * 2):
        for j in range(Wo2 * 2):
            if (i // 2) < 3 and (j // 2) < 3:
                pw[i, j] = 1.0 / (4.0 * 9.0)
    return jnp.asarray(pw.reshape(-1, 1))


def gao_forward(x_nchw, p):
    N, Cin, H, W = x_nchw.shape
    Ho, Wo = H - 2, W - 2
    M = N * Ho * Wo
    g = p["w0"].shape[-1]
    C = p["w1"].shape[1]                 # 2 * growth_rate
    n_classes = p["fcw"].shape[1]

    # ---- one-time layout prep in the wrapper (transpose / split / pad) ----
    x = jnp.transpose(x_nchw, (0, 2, 3, 1))              # NCHW -> NHWC
    xpt = _im2col_3x3_t(x)                               # (9*Cin, M)
    # TODO(synk): at large H,W / batch, replace wrapper im2col with in-kernel
    # shifted-window accumulation inside an M-tiled grid with two-pass BN
    # (also needed to use both v7x TensorCores and fit 64 MiB VMEM).
    w0t = jnp.transpose(p["w0"].reshape(9 * Cin, g))      # (g, 9*Cin)
    w1t = jnp.transpose(p["w1"])
    w11t = jnp.transpose(p["w11"])
    w12t = jnp.transpose(p["w12"])
    w13at = jnp.transpose(p["w13"][:C])                   # applies to x1
    w13bt = jnp.transpose(p["w13"][C:])                   # applies to d1
    wfxt = jnp.transpose(p["wf"][:C] + p["wf"][C:2 * C])  # folded duplicate x1
    wfd1t = jnp.transpose(p["wf"][2 * C:3 * C])
    wfd2t = jnp.transpose(p["wf"][3 * C:])
    w14t = jnp.transpose(p["w14"])
    pw = _pool_weights(Ho, Wo)                            # (Ho*Wo, 1)
    fcwt_pad = jnp.zeros((NCLS_PAD, C), jnp.float32).at[:n_classes, :].set(
        jnp.transpose(p["fcw"]))
    fcbt_pad = jnp.zeros((NCLS_PAD, 1), jnp.float32).at[:n_classes, :].set(
        jnp.transpose(p["fcb"]))

    inputs = (xpt, w0t, w1t, w11t, w12t, w13at, w13bt, w14t,
              wfxt, wfd1t, wfd2t, pw, fcwt_pad, fcbt_pad)

    flops = int(2 * M * (9 * Cin * g + g * C + 8 * C * C)
                + 2 * M * C + 2 * N * C * NCLS_PAD)
    bytes_accessed = int(4 * (sum(int(a.size) for a in inputs) + NCLS_PAD * N))
    transcendentals = int(g + 6 * C)   # one rsqrt per BN channel

    out_pad = pl.pallas_call(
        gao_kernel,
        out_shape=jax.ShapeDtypeStruct((NCLS_PAD, N), jnp.float32),
        in_specs=[pl.BlockSpec(memory_space=pltpu.MemorySpace.VMEM)] * len(inputs),
        out_specs=pl.BlockSpec(memory_space=pltpu.MemorySpace.VMEM),
        compiler_params=pltpu.CompilerParams(vmem_limit_bytes=64 << 20),
        cost_estimate=pl.CostEstimate(flops=flops,
                                      transcendentals=transcendentals,
                                      bytes_accessed=bytes_accessed),
    )(*inputs)
    return jnp.transpose(out_pad[:n_classes, :])          # (N, n_classes)


# ---------------- pure-JAX reference (for correctness check) ----------------
def _bn_relu_nhwc(y):
    mean = jnp.mean(y, axis=(0, 1, 2), keepdims=True)
    var = jnp.mean((y - mean) ** 2, axis=(0, 1, 2), keepdims=True)
    return jnp.maximum((y - mean) / jnp.sqrt(var + EPS), 0.0)


def gao_reference(x_nchw, p):
    x = jnp.transpose(x_nchw, (0, 2, 3, 1))
    y = jax.lax.conv_general_dilated(
        x, p["w0"], (1, 1), "VALID",
        dimension_numbers=("NHWC", "HWIO", "NHWC"))
    x0 = _bn_relu_nhwc(y)

    def c1(x_, w):
        return _bn_relu_nhwc(jnp.einsum("nhwc,cd->nhwd", x_, w))

    x1 = c1(x0, p["w1"])
    d1 = c1(x1, p["w11"])
    d1 = c1(d1, p["w12"])
    dens1 = jnp.concatenate([x1, d1], axis=-1)
    d2 = c1(dens1, p["w13"])
    d2 = c1(d2, p["w14"])
    cat = jnp.concatenate([x1, dens1, d2], axis=-1)
    f = c1(cat, p["wf"])
    N, Ho, Wo, Cc = f.shape
    Ho2, Wo2 = Ho // 2, Wo // 2
    p1 = f[:, :Ho2 * 2, :Wo2 * 2, :].reshape(N, Ho2, 2, Wo2, 2, Cc).mean(axis=(2, 4))
    Ho3, Wo3 = Ho2 // 3, Wo2 // 3
    p2 = p1[:, :Ho3 * 3, :Wo3 * 3, :].reshape(N, Ho3, 3, Wo3, 3, Cc).mean(axis=(2, 4))
    flat = p2.reshape(N, -1)
    return flat @ p["fcw"] + p["fcb"][0]


if __name__ == "__main__":
    # 8x8 spatial -> 6x6 after the valid 3x3 conv -> 3x3 after avgpool(2,2)
    # -> 1x1 after global avgpool(3,3), matching the fc(growth_rate*2, ...).
    N, Cin, H, W = 2, 4, 8, 8
    g, n_classes = 8, 10

    key = jax.random.PRNGKey(0)
    ks = jax.random.split(key, 10)

    def conv_std(kh, kw, cout):
        return math.sqrt(2.0 / (kh * kw * cout))  # per module __init__

    params = {
        "w0":  jax.random.normal(ks[0], (3, 3, Cin, g), jnp.float32) * conv_std(3, 3, g),
        "w1":  jax.random.normal(ks[1], (g, 2 * g), jnp.float32) * conv_std(1, 1, 2 * g),
        "w11": jax.random.normal(ks[2], (2 * g, 2 * g), jnp.float32) * conv_std(1, 1, 2 * g),
        "w12": jax.random.normal(ks[3], (2 * g, 2 * g), jnp.float32) * conv_std(1, 1, 2 * g),
        "w13": jax.random.normal(ks[4], (4 * g, 2 * g), jnp.float32) * conv_std(1, 1, 2 * g),
        "w14": jax.random.normal(ks[5], (2 * g, 2 * g), jnp.float32) * conv_std(1, 1, 2 * g),
        "wf":  jax.random.normal(ks[6], (8 * g, 2 * g), jnp.float32) * conv_std(1, 1, 2 * g),
        # nn.Linear default weight init (uniform +/- 1/sqrt(fan_in)), bias zeroed.
        "fcw": jax.random.uniform(ks[7], (2 * g, n_classes), jnp.float32,
                                  minval=-1.0 / math.sqrt(2 * g),
                                  maxval=1.0 / math.sqrt(2 * g)),
        "fcb": jnp.zeros((1, n_classes), jnp.float32),
    }

    x = jax.random.normal(ks[8], (N, Cin, H, W), jnp.float32)

    out = jax.block_until_ready(gao_forward(x, params))
    ref = jax.block_until_ready(gao_reference(x, params))

    assert out.shape == (N, n_classes)
    np.testing.assert_allclose(np.asarray(out), np.asarray(ref), rtol=1e-4, atol=2e-4)

    print("KERNEL_OK")
</pallas_src>

<mosaic_0001>
module attributes {stable_mosaic.version = 11 : i64} {
  func.func @gao_kernel(%arg0: memref<36x72xf32, #tpu.memory_space<vmem>>, %arg1: memref<8x36xf32, #tpu.memory_space<vmem>>, %arg2: memref<16x8xf32, #tpu.memory_space<vmem>>, %arg3: memref<16x16xf32, #tpu.memory_space<vmem>>, %arg4: memref<16x16xf32, #tpu.memory_space<vmem>>, %arg5: memref<16x16xf32, #tpu.memory_space<vmem>>, %arg6: memref<16x16xf32, #tpu.memory_space<vmem>>, %arg7: memref<16x16xf32, #tpu.memory_space<vmem>>, %arg8: memref<16x16xf32, #tpu.memory_space<vmem>>, %arg9: memref<16x16xf32, #tpu.memory_space<vmem>>, %arg10: memref<16x16xf32, #tpu.memory_space<vmem>>, %arg11: memref<36x1xf32, #tpu.memory_space<vmem>>, %arg12: memref<128x16xf32, #tpu.memory_space<vmem>>, %arg13: memref<128x1xf32, #tpu.memory_space<vmem>>, %arg14: memref<128x2xf32, #tpu.memory_space<vmem>>) attributes {dimension_semantics = [], scalar_prefetch = 0 : i64, scratch_operands = 0 : i64, tpu.core_type = #tpu.core_type<tc>} {
    %c0 = arith.constant 0 : index
    %c0_0 = arith.constant 0 : index
    %0 = vector.load %arg1[%c0, %c0_0] : memref<8x36xf32, #tpu.memory_space<vmem>>, vector<8x36xf32>
    %c0_1 = arith.constant 0 : index
    %c0_2 = arith.constant 0 : index
    %1 = vector.load %arg0[%c0_1, %c0_2] : memref<36x72xf32, #tpu.memory_space<vmem>>, vector<36x72xf32>
    %cst = arith.constant dense<0.000000e+00> : vector<8x72xf32>
    %2 = tpu.matmul %0, %1, %cst {dimension_numbers = #tpu.dot_dimension_numbers<[1], [0], [0], [1], [0, 0, 1, 1], [], []>} : vector<8x36xf32>, vector<36x72xf32>, vector<8x72xf32> -> vector<8x72xf32>
    %cst_3 = arith.constant dense<0.000000e+00> : vector<8xf32>
    %3 = vector.multi_reduction <add>, %2, %cst_3 [1] : vector<8x72xf32> to vector<8xf32>
    %4 = vector.shape_cast %3 : vector<8xf32> to vector<8x1xf32>
    %5 = arith.mulf %2, %2 : vector<8x72xf32>
    %cst_4 = arith.constant dense<0.000000e+00> : vector<8xf32>
    %6 = vector.multi_reduction <add>, %5, %cst_4 [1] : vector<8x72xf32> to vector<8xf32>
    %7 = vector.shape_cast %6 : vector<8xf32> to vector<8x1xf32>
    %cst_5 = arith.constant 0.013888889 : f32
    %8 = vector.broadcast %cst_5 : f32 to vector<8x1xf32>
    %9 = arith.mulf %4, %8 : vector<8x1xf32>
    %cst_6 = arith.constant 0.013888889 : f32
    %10 = vector.broadcast %cst_6 : f32 to vector<8x1xf32>
    %11 = arith.mulf %7, %10 : vector<8x1xf32>
    %12 = arith.mulf %9, %9 : vector<8x1xf32>
    %13 = arith.subf %11, %12 : vector<8x1xf32>
    %cst_7 = arith.constant 0.000000e+00 : f32
    %14 = vector.broadcast %cst_7 : f32 to vector<8x1xf32>
    %15 = arith.maximumf %13, %14 : vector<8x1xf32>
    %16 = vector.broadcast %9 : vector<8x1xf32> to vector<8x72xf32>
    %17 = arith.subf %2, %16 : vector<8x72xf32>
    %cst_8 = arith.constant 9.99999974E-6 : f32
    %18 = vector.broadcast %cst_8 : f32 to vector<8x1xf32>
    %19 = arith.addf %15, %18 : vector<8x1xf32>
    %20 = math.rsqrt %19 : vector<8x1xf32>
    %21 = vector.broadcast %20 : vector<8x1xf32> to vector<8x72xf32>
    %22 = arith.mulf %17, %21 : vector<8x72xf32>
    %cst_9 = arith.constant 0.000000e+00 : f32
    %23 = vector.broadcast %cst_9 : f32 to vector<8x72xf32>
    %24 = arith.maximumf %22, %23 : vector<8x72xf32>
    %c0_10 = arith.constant 0 : index
    %c0_11 = arith.constant 0 : index
    %25 = vector.load %arg2[%c0_10, %c0_11] : memref<16x8xf32, #tpu.memory_space<vmem>>, vector<16x8xf32>
    %cst_12 = arith.constant dense<0.000000e+00> : vector<16x72xf32>
    %26 = tpu.matmul %25, %24, %cst_12 {dimension_numbers = #tpu.dot_dimension_numbers<[1], [0], [0], [1], [0, 0, 1, 1], [], []>} : vector<16x8xf32>, vector<8x72xf32>, vector<16x72xf32> -> vector<16x72xf32>
    %cst_13 = arith.constant dense<0.000000e+00> : vector<16xf32>
    %27 = vector.multi_reduction <add>, %26, %cst_13 [1] : vector<16x72xf32> to vector<16xf32>
    %28 = vector.shape_cast %27 : vector<16xf32> to vector<16x1xf32>
    %29 = arith.mulf %26, %26 : vector<16x72xf32>
    %cst_14 = arith.constant dense<0.000000e+00> : vector<16xf32>
    %30 = vector.multi_reduction <add>, %29, %cst_14 [1] : vector<16x72xf32> to vector<16xf32>
    %31 = vector.shape_cast %30 : vector<16xf32> to vector<16x1xf32>
    %cst_15 = arith.constant 0.013888889 : f32
    %32 = vector.broadcast %cst_15 : f32 to vector<16x1xf32>
    %33 = arith.mulf %28, %32 : vector<16x1xf32>
    %cst_16 = arith.constant 0.013888889 : f32
    %34 = vector.broadcast %cst_16 : f32 to vector<16x1xf32>
    %35 = arith.mulf %31, %34 : vector<16x1xf32>
    %36 = arith.mulf %33, %33 : vector<16x1xf32>
    %37 = arith.subf %35, %36 : vector<16x1xf32>
    %cst_17 = arith.constant 0.000000e+00 : f32
    %38 = vector.broadcast %cst_17 : f32 to vector<16x1xf32>
    %39 = arith.maximumf %37, %38 : vector<16x1xf32>
    %40 = vector.broadcast %33 : vector<16x1xf32> to vector<16x72xf32>
    %41 = arith.subf %26, %40 : vector<16x72xf32>
    %cst_18 = arith.constant 9.99999974E-6 : f32
    %42 = vector.broadcast %cst_18 : f32 to vector<16x1xf32>
    %43 = arith.addf %39, %42 : vector<16x1xf32>
    %44 = math.rsqrt %43 : vector<16x1xf32>
    %45 = vector.broadcast %44 : vector<16x1xf32> to vector<16x72xf32>
    %46 = arith.mulf %41, %45 : vector<16x72xf32>
    %cst_19 = arith.constant 0.000000e+00 : f32
    %47 = vector.broadcast %cst_19 : f32 to vector<16x72xf32>
    %48 = arith.maximumf %46, %47 : vector<16x72xf32>
    %c0_20 = arith.constant 0 : index
    %c0_21 = arith.constant 0 : index
    %49 = vector.load %arg3[%c0_20, %c0_21] : memref<16x16xf32, #tpu.memory_space<vmem>>, vector<16x16xf32>
    %cst_22 = arith.constant dense<0.000000e+00> : vector<16x72xf32>
    %50 = tpu.matmul %49, %48, %cst_22 {dimension_numbers = #tpu.dot_dimension_numbers<[1], [0], [0], [1], [0, 0, 1, 1], [], []>} : vector<16x16xf32>, vector<16x72xf32>, vector<16x72xf32> -> vector<16x72xf32>
    %cst_23 = arith.constant dense<0.000000e+00> : vector<16xf32>
    %51 = vector.multi_reduction <add>, %50, %cst_23 [1] : vector<16x72xf32> to vector<16xf32>
    %52 = vector.shape_cast %51 : vector<16xf32> to vector<16x1xf32>
    %53 = arith.mulf %50, %50 : vector<16x72xf32>
    %cst_24 = arith.constant dense<0.000000e+00> : vector<16xf32>
    %54 = vector.multi_reduction <add>, %53, %cst_24 [1] : vector<16x72xf32> to vector<16xf32>
    %55 = vector.shape_cast %54 : vector<16xf32> to vector<16x1xf32>
    %cst_25 = arith.constant 0.013888889 : f32
    %56 = vector.broadcast %cst_25 : f32 to vector<16x1xf32>
    %57 = arith.mulf %52, %56 : vector<16x1xf32>
    %cst_26 = arith.constant 0.013888889 : f32
    %58 = vector.broadcast %cst_26 : f32 to vector<16x1xf32>
    %59 = arith.mulf %55, %58 : vector<16x1xf32>
    %60 = arith.mulf %57, %57 : vector<16x1xf32>
    %61 = arith.subf %59, %60 : vector<16x1xf32>
    %cst_27 = arith.constant 0.000000e+00 : f32
    %62 = vector.broadcast %cst_27 : f32 to vector<16x1xf32>
    %63 = arith.maximumf %61, %62 : vector<16x1xf32>
    %64 = vector.broadcast %57 : vector<16x1xf32> to vector<16x72xf32>
    %65 = arith.subf %50, %64 : vector<16x72xf32>
    %cst_28 = arith.constant 9.99999974E-6 : f32
    %66 = vector.broadcast %cst_28 : f32 to vector<16x1xf32>
    %67 = arith.addf %63, %66 : vector<16x1xf32>
    %68 = math.rsqrt %67 : vector<16x1xf32>
    %69 = vector.broadcast %68 : vector<16x1xf32> to vector<16x72xf32>
    %70 = arith.mulf %65, %69 : vector<16x72xf32>
    %cst_29 = arith.constant 0.000000e+00 : f32
    %71 = vector.broadcast %cst_29 : f32 to vector<16x72xf32>
    %72 = arith.maximumf %70, %71 : vector<16x72xf32>
    %c0_30 = arith.constant 0 : index
    %c0_31 = arith.constant 0 : index
    %73 = vector.load %arg4[%c0_30, %c0_31] : memref<16x16xf32, #tpu.memory_space<vmem>>, vector<16x16xf32>
    %cst_32 = arith.constant dense<0.000000e+00> : vector<16x72xf32>
    %74 = tpu.matmul %73, %72, %cst_32 {dimension_numbers = #tpu.dot_dimension_numbers<[1], [0], [0], [1], [0, 0, 1, 1], [], []>} : vector<16x16xf32>, vector<16x72xf32>, vector<16x72xf32> -> vector<16x72xf32>
    %cst_33 = arith.constant dense<0.000000e+00> : vector<16xf32>
    %75 = vector.multi_reduction <add>, %74, %cst_33 [1] : vector<16x72xf32> to vector<16xf32>
    %76 = vector.shape_cast %75 : vector<16xf32> to vector<16x1xf32>
    %77 = arith.mulf %74, %74 : vector<16x72xf32>
    %cst_34 = arith.constant dense<0.000000e+00> : vector<16xf32>
    %78 = vector.multi_reduction <add>, %77, %cst_34 [1] : vector<16x72xf32> to vector<16xf32>
    %79 = vector.shape_cast %78 : vector<16xf32> to vector<16x1xf32>
    %cst_35 = arith.constant 0.013888889 : f32
    %80 = vector.broadcast %cst_35 : f32 to vector<16x1xf32>
    %81 = arith.mulf %76, %80 : vector<16x1xf32>
    %cst_36 = arith.constant 0.013888889 : f32
    %82 = vector.broadcast %cst_36 : f32 to vector<16x1xf32>
    %83 = arith.mulf %79, %82 : vector<16x1xf32>
    %84 = arith.mulf %81, %81 : vector<16x1xf32>
    %85 = arith.subf %83, %84 : vector<16x1xf32>
    %cst_37 = arith.constant 0.000000e+00 : f32
    %86 = vector.broadcast %cst_37 : f32 to vector<16x1xf32>
    %87 = arith.maximumf %85, %86 : vector<16x1xf32>
    %88 = vector.broadcast %81 : vector<16x1xf32> to vector<16x72xf32>
    %89 = arith.subf %74, %88 : vector<16x72xf32>
    %cst_38 = arith.constant 9.99999974E-6 : f32
    %90 = vector.broadcast %cst_38 : f32 to vector<16x1xf32>
    %91 = arith.addf %87, %90 : vector<16x1xf32>
    %92 = math.rsqrt %91 : vector<16x1xf32>
    %93 = vector.broadcast %92 : vector<16x1xf32> to vector<16x72xf32>
    %94 = arith.mulf %89, %93 : vector<16x72xf32>
    %cst_39 = arith.constant 0.000000e+00 : f32
    %95 = vector.broadcast %cst_39 : f32 to vector<16x72xf32>
    %96 = arith.maximumf %94, %95 : vector<16x72xf32>
    %c0_40 = arith.constant 0 : index
    %c0_41 = arith.constant 0 : index
    %97 = vector.load %arg5[%c0_40, %c0_41] : memref<16x16xf32, #tpu.memory_space<vmem>>, vector<16x16xf32>
    %cst_42 = arith.constant dense<0.000000e+00> : vector<16x72xf32>
    %98 = tpu.matmul %97, %48, %cst_42 {dimension_numbers = #tpu.dot_dimension_numbers<[1], [0], [0], [1], [0, 0, 1, 1], [], []>} : vector<16x16xf32>, vector<16x72xf32>, vector<16x72xf32> -> vector<16x72xf32>
    %c0_43 = arith.constant 0 : index
    %c0_44 = arith.constant 0 : index
    %99 = vector.load %arg6[%c0_43, %c0_44] : memref<16x16xf32, #tpu.memory_space<vmem>>, vector<16x16xf32>
    %cst_45 = arith.constant dense<0.000000e+00> : vector<16x72xf32>
    %100 = tpu.matmul %99, %96, %cst_45 {dimension_numbers = #tpu.dot_dimension_numbers<[1], [0], [0], [1], [0, 0, 1, 1], [], []>} : vector<16x16xf32>, vector<16x72xf32>, vector<16x72xf32> -> vector<16x72xf32>
    %101 = arith.addf %98, %100 : vector<16x72xf32>
    %cst_46 = arith.constant dense<0.000000e+00> : vector<16xf32>
    %102 = vector.multi_reduction <add>, %101, %cst_46 [1] : vector<16x72xf32> to vector<16xf32>
    %103 = vector.shape_cast %102 : vector<16xf32> to vector<16x1xf32>
    %104 = arith.mulf %101, %101 : vector<16x72xf32>
    %cst_47 = arith.constant dense<0.000000e+00> : vector<16xf32>
    %105 = vector.multi_reduction <add>, %104, %cst_47 [1] : vector<16x72xf32> to vector<16xf32>
    %106 = vector.shape_cast %105 : vector<16xf32> to vector<16x1xf32>
    %cst_48 = arith.constant 0.013888889 : f32
    %107 = vector.broadcast %cst_48 : f32 to vector<16x1xf32>
    %108 = arith.mulf %103, %107 : vector<16x1xf32>
    %cst_49 = arith.constant 0.013888889 : f32
    %109 = vector.broadcast %cst_49 : f32 to vector<16x1xf32>
    %110 = arith.mulf %106, %109 : vector<16x1xf32>
    %111 = arith.mulf %108, %108 : vector<16x1xf32>
    %112 = arith.subf %110, %111 : vector<16x1xf32>
    %cst_50 = arith.constant 0.000000e+00 : f32
    %113 = vector.broadcast %cst_50 : f32 to vector<16x1xf32>
    %114 = arith.maximumf %112, %113 : vector<16x1xf32>
    %115 = vector.broadcast %108 : vector<16x1xf32> to vector<16x72xf32>
    %116 = arith.subf %101, %115 : vector<16x72xf32>
    %cst_51 = arith.constant 9.99999974E-6 : f32
    %117 = vector.broadcast %cst_51 : f32 to vector<16x1xf32>
    %118 = arith.addf %114, %117 : vector<16x1xf32>
    %119 = math.rsqrt %118 : vector<16x1xf32>
    %120 = vector.broadcast %119 : vector<16x1xf32> to vector<16x72xf32>
    %121 = arith.mulf %116, %120 : vector<16x72xf32>
    %cst_52 = arith.constant 0.000000e+00 : f32
    %122 = vector.broadcast %cst_52 : f32 to vector<16x72xf32>
    %123 = arith.maximumf %121, %122 : vector<16x72xf32>
    %c0_53 = arith.constant 0 : index
    %c0_54 = arith.constant 0 : index
    %124 = vector.load %arg7[%c0_53, %c0_54] : memref<16x16xf32, #tpu.memory_space<vmem>>, vector<16x16xf32>
    %cst_55 = arith.constant dense<0.000000e+00> : vector<16x72xf32>
    %125 = tpu.matmul %124, %123, %cst_55 {dimension_numbers = #tpu.dot_dimension_numbers<[1], [0], [0], [1], [0, 0, 1, 1], [], []>} : vector<16x16xf32>, vector<16x72xf32>, vector<16x72xf32> -> vector<16x72xf32>
    %cst_56 = arith.constant dense<0.000000e+00> : vector<16xf32>
    %126 = vector.multi_reduction <add>, %125, %cst_56 [1] : vector<16x72xf32> to vector<16xf32>
    %127 = vector.shape_cast %126 : vector<16xf32> to vector<16x1xf32>
    %128 = arith.mulf %125, %125 : vector<16x72xf32>
    %cst_57 = arith.constant dense<0.000000e+00> : vector<16xf32>
    %129 = vector.multi_reduction <add>, %128, %cst_57 [1] : vector<16x72xf32> to vector<16xf32>
    %130 = vector.shape_cast %129 : vector<16xf32> to vector<16x1xf32>
    %cst_58 = arith.constant 0.013888889 : f32
    %131 = vector.broadcast %cst_58 : f32 to vector<16x1xf32>
    %132 = arith.mulf %127, %131 : vector<16x1xf32>
    %cst_59 = arith.constant 0.013888889 : f32
    %133 = vector.broadcast %cst_59 : f32 to vector<16x1xf32>
    %134 = arith.mulf %130, %133 : vector<16x1xf32>
    %135 = arith.mulf %132, %132 : vector<16x1xf32>
    %136 = arith.subf %134, %135 : vector<16x1xf32>
    %cst_60 = arith.constant 0.000000e+00 : f32
    %137 = vector.broadcast %cst_60 : f32 to vector<16x1xf32>
    %138 = arith.maximumf %136, %137 : vector<16x1xf32>
    %139 = vector.broadcast %132 : vector<16x1xf32> to vector<16x72xf32>
    %140 = arith.subf %125, %139 : vector<16x72xf32>
    %cst_61 = arith.constant 9.99999974E-6 : f32
    %141 = vector.broadcast %cst_61 : f32 to vector<16x1xf32>
    %142 = arith.addf %138, %141 : vector<16x1xf32>
    %143 = math.rsqrt %142 : vector<16x1xf32>
    %144 = vector.broadcast %143 : vector<16x1xf32> to vector<16x72xf32>
    %145 = arith.mulf %140, %144 : vector<16x72xf32>
    %cst_62 = arith.constant 0.000000e+00 : f32
    %146 = vector.broadcast %cst_62 : f32 to vector<16x72xf32>
    %147 = arith.maximumf %145, %146 : vector<16x72xf32>
    %c0_63 = arith.constant 0 : index
    %c0_64 = arith.constant 0 : index
    %148 = vector.load %arg8[%c0_63, %c0_64] : memref<16x16xf32, #tpu.memory_space<vmem>>, vector<16x16xf32>
    %cst_65 = arith.constant dense<0.000000e+00> : vector<16x72xf32>
    %149 = tpu.matmul %148, %48, %cst_65 {dimension_numbers = #tpu.dot_dimension_numbers<[1], [0], [0], [1], [0, 0, 1, 1], [], []>} : vector<16x16xf32>, vector<16x72xf32>, vector<16x72xf32> -> vector<16x72xf32>
    %c0_66 = arith.constant 0 : index
    %c0_67 = arith.constant 0 : index
    %150 = vector.load %arg9[%c0_66, %c0_67] : memref<16x16xf32, #tpu.memory_space<vmem>>, vector<16x16xf32>
    %cst_68 = arith.constant dense<0.000000e+00> : vector<16x72xf32>
    %151 = tpu.matmul %150, %96, %cst_68 {dimension_numbers = #tpu.dot_dimension_numbers<[1], [0], [0], [1], [0, 0, 1, 1], [], []>} : vector<16x16xf32>, vector<16x72xf32>, vector<16x72xf32> -> vector<16x72xf32>
    %152 = arith.addf %149, %151 : vector<16x72xf32>
    %c0_69 = arith.constant 0 : index
    %c0_70 = arith.constant 0 : index
    %153 = vector.load %arg10[%c0_69, %c0_70] : memref<16x16xf32, #tpu.memory_space<vmem>>, vector<16x16xf32>
    %cst_71 = arith.constant dense<0.000000e+00> : vector<16x72xf32>
    %154 = tpu.matmul %153, %147, %cst_71 {dimension_numbers = #tpu.dot_dimension_numbers<[1], [0], [0], [1], [0, 0, 1, 1], [], []>} : vector<16x16xf32>, vector<16x72xf32>, vector<16x72xf32> -> vector<16x72xf32>
    %155 = arith.addf %152, %154 : vector<16x72xf32>
    %cst_72 = arith.constant dense<0.000000e+00> : vector<16xf32>
    %156 = vector.multi_reduction <add>, %155, %cst_72 [1] : vector<16x72xf32> to vector<16xf32>
    %157 = vector.shape_cast %156 : vector<16xf32> to vector<16x1xf32>
    %158 = arith.mulf %155, %155 : vector<16x72xf32>
    %cst_73 = arith.constant dense<0.000000e+00> : vector<16xf32>
    %159 = vector.multi_reduction <add>, %158, %cst_73 [1] : vector<16x72xf32> to vector<16xf32>
    %160 = vector.shape_cast %159 : vector<16xf32> to vector<16x1xf32>
    %cst_74 = arith.constant 0.013888889 : f32
    %161 = vector.broadcast %cst_74 : f32 to vector<16x1xf32>
    %162 = arith.mulf %157, %161 : vector<16x1xf32>
    %cst_75 = arith.constant 0.013888889 : f32
    %163 = vector.broadcast %cst_75 : f32 to vector<16x1xf32>
    %164 = arith.mulf %160, %163 : vector<16x1xf32>
    %165 = arith.mulf %162, %162 : vector<16x1xf32>
    %166 = arith.subf %164, %165 : vector<16x1xf32>
    %cst_76 = arith.constant 0.000000e+00 : f32
    %167 = vector.broadcast %cst_76 : f32 to vector<16x1xf32>
    %168 = arith.maximumf %166, %167 : vector<16x1xf32>
    %169 = vector.broadcast %162 : vector<16x1xf32> to vector<16x72xf32>
    %170 = arith.subf %155, %169 : vector<16x72xf32>
    %cst_77 = arith.constant 9.99999974E-6 : f32
    %171 = vector.broadcast %cst_77 : f32 to vector<16x1xf32>
    %172 = arith.addf %168, %171 : vector<16x1xf32>
    %173 = math.rsqrt %172 : vector<16x1xf32>
    %174 = vector.broadcast %173 : vector<16x1xf32> to vector<16x72xf32>
    %175 = arith.mulf %170, %174 : vector<16x72xf32>
    %cst_78 = arith.constant 0.000000e+00 : f32
    %176 = vector.broadcast %cst_78 : f32 to vector<16x72xf32>
    %177 = arith.maximumf %175, %176 : vector<16x72xf32>
    %178 = vector.extract_strided_slice %177 {offsets = [0, 0], sizes = [16, 36], strides = [1, 1]} : vector<16x72xf32> to vector<16x36xf32>
    %c0_79 = arith.constant 0 : index
    %c0_80 = arith.constant 0 : index
    %179 = vector.load %arg11[%c0_79, %c0_80] : memref<36x1xf32, #tpu.memory_space<vmem>>, vector<36x1xf32>
    %cst_81 = arith.constant dense<0.000000e+00> : vector<16x1xf32>
    %180 = tpu.matmul %178, %179, %cst_81 {dimension_numbers = #tpu.dot_dimension_numbers<[1], [0], [0], [1], [0, 0, 1, 1], [], []>} : vector<16x36xf32>, vector<36x1xf32>, vector<16x1xf32> -> vector<16x1xf32>
    %181 = vector.extract_strided_slice %177 {offsets = [0, 36], sizes = [16, 36], strides = [1, 1]} : vector<16x72xf32> to vector<16x36xf32>
    %c0_82 = arith.constant 0 : index
    %c0_83 = arith.constant 0 : index
    %182 = vector.load %arg11[%c0_82, %c0_83] : memref<36x1xf32, #tpu.memory_space<vmem>>, vector<36x1xf32>
    %cst_84 = arith.constant dense<0.000000e+00> : vector<16x1xf32>
    %183 = tpu.matmul %181, %182, %cst_84 {dimension_numbers = #tpu.dot_dimension_numbers<[1], [0], [0], [1], [0, 0, 1, 1], [], []>} : vector<16x36xf32>, vector<36x1xf32>, vector<16x1xf32> -> vector<16x1xf32>
    %184 = tpu.concatenate %180, %183 in 1 : vector<16x1xf32>, vector<16x1xf32> -> vector<16x2xf32>
    %c0_85 = arith.constant 0 : index
    %c0_86 = arith.constant 0 : index
    %185 = vector.load %arg12[%c0_85, %c0_86] : memref<128x16xf32, #tpu.memory_space<vmem>>, vector<128x16xf32>
    %cst_87 = arith.constant dense<0.000000e+00> : vector<128x2xf32>
    %186 = tpu.matmul %185, %184, %cst_87 {dimension_numbers = #tpu.dot_dimension_numbers<[1], [0], [0], [1], [0, 0, 1, 1], [], []>} : vector<128x16xf32>, vector<16x2xf32>, vector<128x2xf32> -> vector<128x2xf32>
    %c0_88 = arith.constant 0 : index
    %c0_89 = arith.constant 0 : index
    %187 = vector.load %arg13[%c0_88, %c0_89] : memref<128x1xf32, #tpu.memory_space<vmem>>, vector<128x1xf32>
    %188 = vector.broadcast %187 : vector<128x1xf32> to vector<128x2xf32>
    %189 = arith.addf %186, %188 : vector<128x2xf32>
    %c0_90 = arith.constant 0 : index
    %c0_91 = arith.constant 0 : index
    %190 = vector.load %arg14[%c0_90, %c0_91] : memref<128x2xf32, #tpu.memory_space<vmem>>, vector<128x2xf32>
    tpu.vector_store %arg14[%c0_90, %c0_91], %189 {strides = array<i32>} : memref<128x2xf32, #tpu.memory_space<vmem>>, vector<128x2xf32>,
    return
  }
}

</mosaic_0001>

<llo_original>
// kernel: tpu_custom_call.1
$region0: #{tpu_custom_call.1}
  #allocation0 [shape = 'u32[]', space=smem, size = 0x4, offset = 0x4, fixed_abs, tag = 'smem constant byte address 0x4 - core index']
  #allocation1 [shape = 'u32[144,128]{1,0:T(1,128)}', space=vmem, size = 0x12000, scoped, tag = 'internal scratch']
  %s0 = inlined_call_operand.hbm [shape: f32[36,72], index: 0, kind: input, shape index: {}]
  %s1 = inlined_call_operand.hbm [shape: f32[8,36], index: 1, kind: input, shape index: {}]
  %s2 = inlined_call_operand.hbm [shape: f32[16,8], index: 2, kind: input, shape index: {}]
  %s3 = inlined_call_operand.hbm [shape: f32[16,16], index: 3, kind: input, shape index: {}]
  %s4 = inlined_call_operand.hbm [shape: f32[16,16], index: 4, kind: input, shape index: {}]
  %s5 = inlined_call_operand.hbm [shape: f32[16,16], index: 5, kind: input, shape index: {}]
  %s6 = inlined_call_operand.hbm [shape: f32[16,16], index: 6, kind: input, shape index: {}]
  %s7 = inlined_call_operand.hbm [shape: f32[16,16], index: 7, kind: input, shape index: {}]
  %s8 = inlined_call_operand.hbm [shape: f32[16,16], index: 8, kind: input, shape index: {}]
  %s9 = inlined_call_operand.hbm [shape: f32[16,16], index: 9, kind: input, shape index: {}]
  %s10 = inlined_call_operand.hbm [shape: f32[16,16], index: 10, kind: input, shape index: {}]
  %s11 = inlined_call_operand.hbm [shape: f32[36,1], index: 11, kind: input, shape index: {}]
  %s12 = inlined_call_operand.hbm [shape: f32[128,16], index: 12, kind: input, shape index: {}]
  %s13 = inlined_call_operand.hbm [shape: f32[128,1], index: 13, kind: input, shape index: {}]
  %s14 = inlined_call_operand.hbm [shape: f32[128,2], index: 14, kind: output, shape index: {}]
  %s15 = sld [smem:[#allocation0]]
  $region122: #{tpu_custom_call.1} parent=0
    _
  %s17 = ssub.s32 1, %s15
  %s18 = scalar_select 0, %s17, %s15
  $region1: #{tpu_custom_call.1} parent=0
    #allocation2 [shape = 'u8[20480]{0}', space=vmem, size = 0x5000, scoped, tag = 'input window, operand 0, single buffered']
    #allocation3 [shape = 's32[1]{0}', space=sflag, size = 0x4, scoped, tag = 'scoped memory for tpu_custom_call.1']
    #allocation4 [shape = 's32[1]{0}', space=sflag, size = 0x4, scoped, tag = 'scoped memory for tpu_custom_call.1']
    #allocation5 [shape = 'u8[4096]{0}', space=vmem, size = 0x1000, scoped, tag = 'input window, operand 1, single buffered']
    #allocation6 [shape = 's32[1]{0}', space=sflag, size = 0x4, scoped, tag = 'scoped memory for tpu_custom_call.1']
    #allocation7 [shape = 'u8[8192]{0}', space=vmem, size = 0x2000, scoped, tag = 'input window, operand 2, single buffered']
    #allocation8 [shape = 'u8[8192]{0}', space=vmem, size = 0x2000, scoped, tag = 'input window, operand 3, single buffered']
    #allocation9 [shape = 's32[1]{0}', space=sflag, size = 0x4, scoped, tag = 'scoped memory for tpu_custom_call.1']
    #allocation10 [shape = 'u8[8192]{0}', space=vmem, size = 0x2000, scoped, tag = 'input window, operand 4, single buffered']
    #allocation11 [shape = 'u8[8192]{0}', space=vmem, size = 0x2000, scoped, tag = 'input window, operand 5, single buffered']
    #allocation12 [shape = 's32[1]{0}', space=sflag, size = 0x4, scoped, tag = 'scoped memory for tpu_custom_call.1']
    #allocation13 [shape = 'u8[8192]{0}', space=vmem, size = 0x2000, scoped, tag = 'input window, operand 6, single buffered']
    #allocation14 [shape = 'u8[8192]{0}', space=vmem, size = 0x2000, scoped, tag = 'input window, operand 7, single buffered']
    #allocation15 [shape = 's32[1]{0}', space=sflag, size = 0x4, scoped, tag = 'scoped memory for tpu_custom_call.1']
    #allocation16 [shape = 'u8[8192]{0}', space=vmem, size = 0x2000, scoped, tag = 'input window, operand 8, single buffered']
    #allocation17 [shape = 'u8[8192]{0}', space=vmem, size = 0x2000, scoped, tag = 'input window, operand 9, single buffered']
    #allocation18 [shape = 's32[1]{0}', space=sflag, size = 0x4, scoped, tag = 'scoped memory for tpu_custom_call.1']
    #allocation19 [shape = 'u8[8192]{0}', space=vmem, size = 0x2000, scoped, tag = 'input window, operand 10, single buffered']
    #allocation20 [shape = 'u8[20480]{0}', space=vmem, size = 0x5000, scoped, tag = 'input window, operand 11, single buffered']
    #allocation21 [shape = 's32[1]{0}', space=sflag, size = 0x4, scoped, tag = 'scoped memory for tpu_custom_call.1']
    #allocation22 [shape = 'u8[65536]{0}', space=vmem, size = 0x10000, scoped, tag = 'input window, operand 12, single buffered']
    #allocation23 [shape = 'u8[65536]{0}', space=vmem, size = 0x10000, scoped, tag = 'input window, operand 13, single buffered']
    #allocation24 [shape = 's32[1]{0}', space=sflag, size = 0x4, scoped, tag = 'scoped memory for tpu_custom_call.1']
    #allocation25 [shape = 'u8[65536]{0}', space=vmem, size = 0x10000, scoped, tag = 'output window, operand 0, single buffered']
    %19 = vsyncpa [#allocation3], 0
    %20 = vsyncpa [#allocation6], 0
    %21 = vsyncpa [#allocation9], 0
    %22 = vsyncpa [#allocation12], 0
    %23 = vsyncpa [#allocation15], 0
    %24 = vsyncpa [#allocation18], 0
    %25 = vsyncpa [#allocation21], 0
    %26 = vsyncpa [#allocation24], 0
    %27 = vsyncpa [#allocation4], 0
    // Predicated region
    $region2: #{tpu_custom_call.1} parent=1 // pred_check
      _
    $region3: #{tpu_custom_call.1} parent=1 // pred_check_branch
      %29 = sbr.rel (0) target = $region5
    $region4: #{tpu_custom_call.1} parent=1 // pred_region
      %s31 = ssub.s32 640, 640
      %32 = vsyncadd [#allocation3], %s31
      %s33 = sshll.u32 [#allocation2], 4
      %s34 = int_to_ptr.vmem [resolvable:$true] %s33
      %39 = dma.hbm_to_vmem [thread:$0]  %s0, 640, %s34, [#allocation3], 128, 128, 8
    $region5: #{tpu_custom_call.1} parent=1 // pred_fallthru
      _
    // Predicated region
    $region6: #{tpu_custom_call.1} parent=1 // pred_check
      _
    $region7: #{tpu_custom_call.1} parent=1 // pred_check_branch
      %41 = sbr.rel (0) target = $region9
    $region8: #{tpu_custom_call.1} parent=1 // pred_region
      %s43 = ssub.s32 128, 128
      %44 = vsyncadd [#allocation6], %s43
      %s46 = sshll.u32 [#allocation5], 4
      %s47 = int_to_ptr.vmem [resolvable:$true] %s46
      %49 = dma.hbm_to_vmem [thread:$0]  %s1, 128, %s47, [#allocation6]
    $region9: #{tpu_custom_call.1} parent=1 // pred_fallthru
      _
    // Predicated region
    $region10: #{tpu_custom_call.1} parent=1 // pred_check
      _
    $region11: #{tpu_custom_call.1} parent=1 // pred_check_branch
      %51 = sbr.rel (0) target = $region13
    $region12: #{tpu_custom_call.1} parent=1 // pred_region
      %s53 = ssub.s32 256, 256
      %54 = vsyncadd [#allocation6], %s53
      %s55 = sshll.u32 [#allocation7], 4
      %s56 = int_to_ptr.vmem [resolvable:$true] %s55
      %61 = dma.hbm_to_vmem [thread:$0]  %s2, 256, %s56, [#allocation6], 128, 128, 8
    $region13: #{tpu_custom_call.1} parent=1 // pred_fallthru
      _
    // Predicated region
    $region14: #{tpu_custom_call.1} parent=1 // pred_check
      _
    $region15: #{tpu_custom_call.1} parent=1 // pred_check_branch
      %63 = sbr.rel (0) target = $region17
    $region16: #{tpu_custom_call.1} parent=1 // pred_region
      %s65 = ssub.s32 256, 256
      %66 = vsyncadd [#allocation9], %s65
      %s67 = sshll.u32 [#allocation8], 4
      %s68 = int_to_ptr.vmem [resolvable:$true] %s67
      %73 = dma.hbm_to_vmem [thread:$0]  %s3, 256, %s68, [#allocation9], 128, 128, 8
    $region17: #{tpu_custom_call.1} parent=1 // pred_fallthru
      _
    // Predicated region
    $region18: #{tpu_custom_call.1} parent=1 // pred_check
      _
    $region19: #{tpu_custom_call.1} parent=1 // pred_check_branch
      %75 = sbr.rel (0) target = $region21
    $region20: #{tpu_custom_call.1} parent=1 // pred_region
      %s77 = ssub.s32 256, 256
      %78 = vsyncadd [#allocation9], %s77
      %s79 = sshll.u32 [#allocation10], 4
      %s80 = int_to_ptr.vmem [resolvable:$true] %s79
      %85 = dma.hbm_to_vmem [thread:$0]  %s4, 256, %s80, [#allocation9], 128, 128, 8
    $region21: #{tpu_custom_call.1} parent=1 // pred_fallthru
      _
    // Predicated region
    $region22: #{tpu_custom_call.1} parent=1 // pred_check
      _
    $region23: #{tpu_custom_call.1} parent=1 // pred_check_branch
      %87 = sbr.rel (0) target = $region25
    $region24: #{tpu_custom_call.1} parent=1 // pred_region
      %s89 = ssub.s32 256, 256
      %90 = vsyncadd [#allocation12], %s89
      %s91 = sshll.u32 [#allocation11], 4
      %s92 = int_to_ptr.vmem [resolvable:$true] %s91
      %97 = dma.hbm_to_vmem [thread:$0]  %s5, 256, %s92, [#allocation12], 128, 128, 8
    $region25: #{tpu_custom_call.1} parent=1 // pred_fallthru
      _
    // Predicated region
    $region26: #{tpu_custom_call.1} parent=1 // pred_check
      _
    $region27: #{tpu_custom_call.1} parent=1 // pred_check_branch
      %99 = sbr.rel (0) target = $region29
    $region28: #{tpu_custom_call.1} parent=1 // pred_region
      %s101 = ssub.s32 256, 256
      %102 = vsyncadd [#allocation12], %s101
      %s103 = sshll.u32 [#allocation13], 4
      %s104 = int_to_ptr.vmem [resolvable:$true] %s103
      %109 = dma.hbm_to_vmem [thread:$0]  %s6, 256, %s104, [#allocation12], 128, 128, 8
    $region29: #{tpu_custom_call.1} parent=1 // pred_fallthru
      _
    // Predicated region
    $region30: #{tpu_custom_call.1} parent=1 // pred_check
      _
    $region31: #{tpu_custom_call.1} parent=1 // pred_check_branch
      %111 = sbr.rel (0) target = $region33
    $region32: #{tpu_custom_call.1} parent=1 // pred_region
      %s113 = ssub.s32 256, 256
      %114 = vsyncadd [#allocation15], %s113
      %s115 = sshll.u32 [#allocation14], 4
      %s116 = int_to_ptr.vmem [resolvable:$true] %s115
      %121 = dma.hbm_to_vmem [thread:$0]  %s7, 256, %s116, [#allocation15], 128, 128, 8
    $region33: #{tpu_custom_call.1} parent=1 // pred_fallthru
      _
    // Predicated region
    $region34: #{tpu_custom_call.1} parent=1 // pred_check
      _
    $region35: #{tpu_custom_call.1} parent=1 // pred_check_branch
      %123 = sbr.rel (0) target = $region37
    $region36: #{tpu_custom_call.1} parent=1 // pred_region
      %s125 = ssub.s32 256, 256
      %126 = vsyncadd [#allocation15], %s125
      %s127 = sshll.u32 [#allocation16], 4
      %s128 = int_to_ptr.vmem [resolvable:$true] %s127
      %133 = dma.hbm_to_vmem [thread:$0]  %s8, 256, %s128, [#allocation15], 128, 128, 8
    $region37: #{tpu_custom_call.1} parent=1 // pred_fallthru
      _
    // Predicated region
    $region38: #{tpu_custom_call.1} parent=1 // pred_check
      _
    $region39: #{tpu_custom_call.1} parent=1 // pred_check_branch
      %135 = sbr.rel (0) target = $region41
    $region40: #{tpu_custom_call.1} parent=1 // pred_region
      %s137 = ssub.s32 256, 256
      %138 = vsyncadd [#allocation18], %s137
      %s139 = sshll.u32 [#allocation17], 4
      %s140 = int_to_ptr.vmem [resolvable:$true] %s139
      %145 = dma.hbm_to_vmem [thread:$0]  %s9, 256, %s140, [#allocation18], 128, 128, 8
    $region41: #{tpu_custom_call.1} parent=1 // pred_fallthru
      _
    // Predicated region
    $region42: #{tpu_custom_call.1} parent=1 // pred_check
      _
    $region43: #{tpu_custom_call.1} parent=1 // pred_check_branch
      %147 = sbr.rel (0) target = $region45
    $region44: #{tpu_custom_call.1} parent=1 // pred_region
      %s149 = ssub.s32 256, 256
      %150 = vsyncadd [#allocation18], %s149
      %s151 = sshll.u32 [#allocation19], 4
      %s152 = int_to_ptr.vmem [resolvable:$true] %s151
      %157 = dma.hbm_to_vmem [thread:$0]  %s10, 256, %s152, [#allocation18], 128, 128, 8
    $region45: #{tpu_custom_call.1} parent=1 // pred_fallthru
      _
    // Predicated region
    $region46: #{tpu_custom_call.1} parent=1 // pred_check
      _
    $region47: #{tpu_custom_call.1} parent=1 // pred_check_branch
      %159 = sbr.rel (0) target = $region49
    $region48: #{tpu_custom_call.1} parent=1 // pred_region
      %s161 = ssub.s32 640, 640
      %162 = vsyncadd [#allocation21], %s161
      %s163 = sshll.u32 [#allocation20], 4
      %s164 = int_to_ptr.vmem [resolvable:$true] %s163
      %169 = dma.hbm_to_vmem [thread:$0]  %s11, 640, %s164, [#allocation21], 128, 128, 8
    $region49: #{tpu_custom_call.1} parent=1 // pred_fallthru
      _
    // Predicated region
    $region50: #{tpu_custom_call.1} parent=1 // pred_check
      _
    $region51: #{tpu_custom_call.1} parent=1 // pred_check_branch
      %171 = sbr.rel (0) target = $region53
    $region52: #{tpu_custom_call.1} parent=1 // pred_region
      %s173 = ssub.s32 2048, 2048
      %174 = vsyncadd [#allocation21], %s173
      %s175 = sshll.u32 [#allocation22], 4
      %s176 = int_to_ptr.vmem [resolvable:$true] %s175
      %181 = dma.hbm_to_vmem [thread:$0]  %s12, 2048, %s176, [#allocation21], 128, 128, 8
    $region53: #{tpu_custom_call.1} parent=1 // pred_fallthru
      _
    // Predicated region
    $region54: #{tpu_custom_call.1} parent=1 // pred_check
      _
    $region55: #{tpu_custom_call.1} parent=1 // pred_check_branch
      %183 = sbr.rel (0) target = $region57
    $region56: #{tpu_custom_call.1} parent=1 // pred_region
      %s185 = ssub.s32 2048, 2048
      %186 = vsyncadd [#allocation24], %s185
      %s187 = sshll.u32 [#allocation23], 4
      %s188 = int_to_ptr.vmem [resolvable:$true] %s187
      %193 = dma.hbm_to_vmem [thread:$0]  %s13, 2048, %s188, [#allocation24], 128, 128, 8
    $region57: #{tpu_custom_call.1} parent=1 // pred_fallthru
      _
    // Predicated region
    $region58: #{tpu_custom_call.1} parent=1 // pred_check
      _
    $region59: #{tpu_custom_call.1} parent=1 // pred_check_branch
      %195 = sbr.rel (0) target = $region61
    $region60: #{tpu_custom_call.1} parent=1 // pred_region
      %196 = dma.done [#allocation3], 640
    $region61: #{tpu_custom_call.1} parent=1 // pred_fallthru
      _
    // Predicated region
    $region62: #{tpu_custom_call.1} parent=1 // pred_check
      _
    $region63: #{tpu_custom_call.1} parent=1 // pred_check_branch
      %198 = sbr.rel (0) target = $region65
    $region64: #{tpu_custom_call.1} parent=1 // pred_region
      %199 = dma.done [#allocation6], 128
    $region65: #{tpu_custom_call.1} parent=1 // pred_fallthru
      _
    // Predicated region
    $region66: #{tpu_custom_call.1} parent=1 // pred_check
      _
    $region67: #{tpu_custom_call.1} parent=1 // pred_check_branch
      %201 = sbr.rel (0) target = $region69
    $region68: #{tpu_custom_call.1} parent=1 // pred_region
      %202 = dma.done [#allocation6], 256
    $region69: #{tpu_custom_call.1} parent=1 // pred_fallthru
      _
    // Predicated region
    $region70: #{tpu_custom_call.1} parent=1 // pred_check
      _
    $region71: #{tpu_custom_call.1} parent=1 // pred_check_branch
      %204 = sbr.rel (0) target = $region73
    $region72: #{tpu_custom_call.1} parent=1 // pred_region
      %205 = dma.done [#allocation9], 256
    $region73: #{tpu_custom_call.1} parent=1 // pred_fallthru
      _
    // Predicated region
    $region74: #{tpu_custom_call.1} parent=1 // pred_check
      _
    $region75: #{tpu_custom_call.1} parent=1 // pred_check_branch
      %207 = sbr.rel (0) target = $region77
    $region76: #{tpu_custom_call.1} parent=1 // pred_region
      %208 = dma.done [#allocation9], 256
    $region77: #{tpu_custom_call.1} parent=1 // pred_fallthru
      _
    // Predicated region
    $region78: #{tpu_custom_call.1} parent=1 // pred_check
      _
    $region79: #{tpu_custom_call.1} parent=1 // pred_check_branch
      %210 = sbr.rel (0) target = $region81
    $region80: #{tpu_custom_call.1} parent=1 // pred_region
      %211 = dma.done [#allocation12], 256
    $region81: #{tpu_custom_call.1} parent=1 // pred_fallthru
      _
    // Predicated region
    $region82: #{tpu_custom_call.1} parent=1 // pred_check
      _
    $region83: #{tpu_custom_call.1} parent=1 // pred_check_branch
      %213 = sbr.rel (0) target = $region85
    $region84: #{tpu_custom_call.1} parent=1 // pred_region
      %214 = dma.done [#allocation12], 256
    $region85: #{tpu_custom_call.1} parent=1 // pred_fallthru
      _
    // Predicated region
    $region86: #{tpu_custom_call.1} parent=1 // pred_check
      _
    $region87: #{tpu_custom_call.1} parent=1 // pred_check_branch
      %216 = sbr.rel (0) target = $region89
    $region88: #{tpu_custom_call.1} parent=1 // pred_region
      %217 = dma.done [#allocation15], 256
    $region89: #{tpu_custom_call.1} parent=1 // pred_fallthru
      _
    // Predicated region
    $region90: #{tpu_custom_call.1} parent=1 // pred_check
      _
    $region91: #{tpu_custom_call.1} parent=1 // pred_check_branch
      %219 = sbr.rel (0) target = $region93
    $region92: #{tpu_custom_call.1} parent=1 // pred_region
      %220 = dma.done [#allocation15], 256
    $region93: #{tpu_custom_call.1} parent=1 // pred_fallthru
      _
    // Predicated region
    $region94: #{tpu_custom_call.1} parent=1 // pred_check
      _
    $region95: #{tpu_custom_call.1} parent=1 // pred_check_branch
      %222 = sbr.rel (0) target = $region97
    $region96: #{tpu_custom_call.1} parent=1 // pred_region
      %223 = dma.done [#allocation18], 256
    $region97: #{tpu_custom_call.1} parent=1 // pred_fallthru
      _
    // Predicated region
    $region98: #{tpu_custom_call.1} parent=1 // pred_check
      _
    $region99: #{tpu_custom_call.1} parent=1 // pred_check_branch
      %225 = sbr.rel (0) target = $region101
    $region100: #{tpu_custom_call.1} parent=1 // pred_region
      %226 = dma.done [#allocation18], 256
    $region101: #{tpu_custom_call.1} parent=1 // pred_fallthru
      _
    // Predicated region
    $region102: #{tpu_custom_call.1} parent=1 // pred_check
      _
    $region103: #{tpu_custom_call.1} parent=1 // pred_check_branch
      %228 = sbr.rel (0) target = $region105
    $region104: #{tpu_custom_call.1} parent=1 // pred_region
      %229 = dma.done [#allocation21], 640
    $region105: #{tpu_custom_call.1} parent=1 // pred_fallthru
      _
    // Predicated region
    $region106: #{tpu_custom_call.1} parent=1 // pred_check
      _
    $region107: #{tpu_custom_call.1} parent=1 // pred_check_branch
      %231 = sbr.rel (0) target = $region109
    $region108: #{tpu_custom_call.1} parent=1 // pred_region
      %232 = dma.done [#allocation21], 2048
    $region109: #{tpu_custom_call.1} parent=1 // pred_fallthru
      _
    // Predicated region
    $region110: #{tpu_custom_call.1} parent=1 // pred_check
      _
    $region111: #{tpu_custom_call.1} parent=1 // pred_check_branch
      %234 = sbr.rel (0) target = $region113
    $region112: #{tpu_custom_call.1} parent=1 // pred_region
      %235 = dma.done [#allocation24], 2048
    $region113: #{tpu_custom_call.1} parent=1 // pred_fallthru
      _
    %v236 = vld [vmem:[#allocation5] sm:$0xff]
    %v237 = vld [vmem:[#allocation2] sm:$0xff]
    %v238 = vld [vmem:[#allocation2 + $0x8] sm:$0xff]
    %v239 = vld [vmem:[#allocation2 + $0x10] sm:$0xff]
    %v240 = vld [vmem:[#allocation2 + $0x18] sm:$0xff]
    %v241 = vld [vmem:[#allocation2 + $0x20] sm:$0xf]
    %vm242 = vcmask 293888
    %v244 = vsel %vm242, %v236, 0
    %vm246 = vcmask 1043456
    %v248 = vsel %vm246, %v241, 0
    %250 = vmatprep.subr.mxu0 0.0
    %251 = vmatpush1.msra.mxu0 %v237
    %252 = vmatprep.subr.mxu0 0.0
    %253 = vmatpush1.msra.mxu0 %v238
    %254 = vmatprep.subr.mxu0 0.0
    %255 = vmatpush1.msra.mxu0 %v239
    %256 = vmatprep.subr.mxu0 0.0
    %257 = vmatpush1.msra.mxu0 %v240
    %258 = vmatprep.subr.mxu0 0.0
    %259 = vmatpush1.msra.mxu0 %v248
    %260 = vmatprep.subr.mxu0 0.0
    %261 = vmatpush1.msra.mxu0 0.0
    %262 = vmatprep.subr.mxu0 0.0
    %263 = vmatpush1.msra.mxu0 0.0
    %264 = vmatprep.subr.mxu0 0.0
    %265 = vmatpush1.msra.mxu0 0.0
    %266 = vmatprep.subr.mxu0 0.0
    %267 = vmatpush1.msra.mxu0 0.0
    %268 = vmatprep.subr.mxu0 0.0
    %269 = vmatpush1.msra.mxu0 0.0
    %270 = vmatprep.subr.mxu0 0.0
    %271 = vmatpush1.msra.mxu0 0.0
    %272 = vmatprep.subr.mxu0 0.0
    %273 = vmatpush1.msra.mxu0 0.0
    %274 = vmatprep.subr.mxu0 0.0
    %275 = vmatpush1.msra.mxu0 0.0
    %276 = vmatprep.subr.mxu0 0.0
    %277 = vmatpush1.msra.mxu0 0.0
    %278 = vmatprep.subr.mxu0 0.0
    %279 = vmatpush1.msra.mxu0 0.0
    %280 = vmatprep.subr.mxu0 0.0
    %281 = vmatpush1.msra.mxu0 0.0
    %282 = vmatprep.subr.mxu0 0.0
    %283 = vmatpush1.msra.mxu0 0.0
    %284 = vmatprep.subr.mxu0 0.0
    %285 = vmatpush1.msra.mxu0 0.0
    %286 = vmatprep.subr.mxu0 0.0
    %287 = vmatpush1.msra.mxu0 0.0
    %288 = vmatprep.subr.mxu0 0.0
    %289 = vmatpush1.msra.mxu0 0.0
    %290 = vmatprep.subr.mxu0 0.0
    %291 = vmatpush1.msra.mxu0 0.0
    %292 = vmatprep.subr.mxu0 0.0
    %293 = vmatpush1.msra.mxu0 0.0
    %294 = vmatprep.subr.mxu0 0.0
    %295 = vmatpush1.msra.mxu0 0.0
    %296 = vmatprep.subr.mxu0 0.0
    %297 = vmatpush1.msra.mxu0 0.0
    %298 = vmatprep.subr.mxu0 0.0
    %299 = vmatpush1.msra.mxu0 0.0
    %300 = vmatprep.subr.mxu0 0.0
    %301 = vmatpush1.msra.mxu0 0.0
    %302 = vmatprep.subr.mxu0 0.0
    %303 = vmatpush1.msra.mxu0 0.0
    %304 = vmatprep.subr.mxu0 0.0
    %305 = vmatpush1.msra.mxu0 0.0
    %306 = vmatprep.subr.mxu0 0.0
    %307 = vmatpush1.msra.mxu0 0.0
    %308 = vmatprep.subr.mxu0 0.0
    %309 = vmatpush1.msra.mxu0 0.0
    %310 = vmatprep.subr.mxu0 0.0
    %311 = vmatpush1.msra.mxu0 0.0
    %312 = vmatprep.subr.mxu0 0.0
    %313 = vmatpush1.msra.mxu0 0.0
    %314 = vmatprep.mubr.f32.mxu0 0.0
    %315 = vmatmul.mubr.f32.gmra.mrb[0].mxu0 %v244
    %v316 = vpop.f32.mrb[0].mxu0
    %v317 = vadd.f32 0.0, %v316
    %v318 = vpop.f32.mrb[0].mxu0
    %319 = vdwg.mxu0
    %vm320 = vcmask 588800
    %v321 = vsel %vm320, %v317, 0.0
    %322 = vadd.xlane.f32.xlu0 %v321
    %v323 = vpop.xlane.xlu0 %322
    %v324 = vmul.f32 %v317, %v317
    %v325 = vsel %vm320, %v324, 0.0
    %326 = vadd.xlane.f32.xlu0 %v325
    %v327 = vpop.xlane.xlu0 %326
    %v328 = vmul.f32 %v323, 0.013888889
    %v329 = vmul.f32 %v327, 0.013888889
    %v330 = vmul.f32 %v328, %v328
    %v331 = vsub.f32 %v329, %v330
    %v332 = vmax.f32 %v331, 0.0
    %v333 = vsub.f32 %v317, %v328
    %v334 = vadd.f32 %v332, 1e-05
    %v335 = vrsqrt.pop %v334
    %v336 = vmul.f32 %v333, %v335
    %v337 = vmax.f32 %v336, 0.0
    %v338 = vld [vmem:[#allocation7] sm:$0xff]
    %v339 = vld [vmem:[#allocation7 + $0x8] sm:$0xff]
    %vm340 = vcmask 64512
    %v342 = vsel %vm340, %v338, 0
    %v345 = vsel %vm340, %v339, 0
    %347 = vmatprep.subr.mxu0 0.0
    %348 = vmatpush1.msra.mxu0 %v337
    %349 = vmatprep.subr.mxu0 0.0
    %350 = vmatpush1.msra.mxu0 0.0
    %351 = vmatprep.subr.mxu0 0.0
    %352 = vmatpush1.msra.mxu0 0.0
    %353 = vmatprep.subr.mxu0 0.0
    %354 = vmatpush1.msra.mxu0 0.0
    %355 = vmatprep.subr.mxu0 0.0
    %356 = vmatpush1.msra.mxu0 0.0
    %357 = vmatprep.subr.mxu0 0.0
    %358 = vmatpush1.msra.mxu0 0.0
    %359 = vmatprep.subr.mxu0 0.0
    %360 = vmatpush1.msra.mxu0 0.0
    %361 = vmatprep.subr.mxu0 0.0
    %362 = vmatpush1.msra.mxu0 0.0
    %363 = vmatprep.subr.mxu0 0.0
    %364 = vmatpush1.msra.mxu0 0.0
    %365 = vmatprep.subr.mxu0 0.0
    %366 = vmatpush1.msra.mxu0 0.0
    %367 = vmatprep.subr.mxu0 0.0
    %368 = vmatpush1.msra.mxu0 0.0
    %369 = vmatprep.subr.mxu0 0.0
    %370 = vmatpush1.msra.mxu0 0.0
    %371 = vmatprep.subr.mxu0 0.0
    %372 = vmatpush1.msra.mxu0 0.0
    %373 = vmatprep.subr.mxu0 0.0
    %374 = vmatpush1.msra.mxu0 0.0
    %375 = vmatprep.subr.mxu0 0.0
    %376 = vmatpush1.msra.mxu0 0.0
    %377 = vmatprep.subr.mxu0 0.0
    %378 = vmatpush1.msra.mxu0 0.0
    %379 = vmatprep.subr.mxu0 0.0
    %380 = vmatpush1.msra.mxu0 0.0
    %381 = vmatprep.subr.mxu0 0.0
    %382 = vmatpush1.msra.mxu0 0.0
    %383 = vmatprep.subr.mxu0 0.0
    %384 = vmatpush1.msra.mxu0 0.0
    %385 = vmatprep.subr.mxu0 0.0
    %386 = vmatpush1.msra.mxu0 0.0
    %387 = vmatprep.subr.mxu0 0.0
    %388 = vmatpush1.msra.mxu0 0.0
    %389 = vmatprep.subr.mxu0 0.0
    %390 = vmatpush1.msra.mxu0 0.0
    %391 = vmatprep.subr.mxu0 0.0
    %392 = vmatpush1.msra.mxu0 0.0
    %393 = vmatprep.subr.mxu0 0.0
    %394 = vmatpush1.msra.mxu0 0.0
    %395 = vmatprep.subr.mxu0 0.0
    %396 = vmatpush1.msra.mxu0 0.0
    %397 = vmatprep.subr.mxu0 0.0
    %398 = vmatpush1.msra.mxu0 0.0
    %399 = vmatprep.subr.mxu0 0.0
    %400 = vmatpush1.msra.mxu0 0.0
    %401 = vmatprep.subr.mxu0 0.0
    %402 = vmatpush1.msra.mxu0 0.0
    %403 = vmatprep.subr.mxu0 0.0
    %404 = vmatpush1.msra.mxu0 0.0
    %405 = vmatprep.subr.mxu0 0.0
    %406 = vmatpush1.msra.mxu0 0.0
    %407 = vmatprep.subr.mxu0 0.0
    %408 = vmatpush1.msra.mxu0 0.0
    %409 = vmatprep.subr.mxu0 0.0
    %410 = vmatpush1.msra.mxu0 0.0
    %411 = vmatprep.mubr.f32.mxu0 0.0
    %412 = vmatmul.mubr.f32.gmra.mrb[0].mxu0 %v342
    %v413 = vpop.f32.mrb[0].mxu0
    %v414 = vadd.f32 0.0, %v413
    %v415 = vpop.f32.mrb[0].mxu0
    %416 = vmatprep.mubr.f32.mxu0 0.0
    %417 = vmatmul.mubr.f32.gmra.mrb[0].mxu0 %v345
    %v418 = vpop.f32.mrb[0].mxu0
    %v419 = vadd.f32 0.0, %v418
    %v420 = vpop.f32.mrb[0].mxu0
    %421 = vdwg.mxu0
    %v422 = vsel %vm320, %v414, 0.0
    %423 = vadd.xlane.f32.xlu0 %v422
    %v424 = vpop.xlane.xlu0 %423
    %v425 = vsel %vm320, %v419, 0.0
    %426 = vadd.xlane.f32.xlu0 %v425
    %v427 = vpop.xlane.xlu0 %426
    %v428 = vmul.f32 %v414, %v414
    %v429 = vmul.f32 %v419, %v419
    %v430 = vsel %vm320, %v428, 0.0
    %431 = vadd.xlane.f32.xlu0 %v430
    %v432 = vpop.xlane.xlu0 %431
    %v433 = vsel %vm320, %v429, 0.0
    %434 = vadd.xlane.f32.xlu0 %v433
    %v435 = vpop.xlane.xlu0 %434
    %v436 = vmul.f32 %v424, 0.013888889
    %v437 = vmul.f32 %v427, 0.013888889
    %v438 = vmul.f32 %v432, 0.013888889
    %v439 = vmul.f32 %v435, 0.013888889
    %v440 = vmul.f32 %v436, %v436
    %v441 = vmul.f32 %v437, %v437
    %v442 = vsub.f32 %v438, %v440
    %v443 = vsub.f32 %v439, %v441
    %v444 = vmax.f32 %v442, 0.0
    %v445 = vmax.f32 %v443, 0.0
    %v446 = vsub.f32 %v414, %v436
    %v447 = vsub.f32 %v419, %v437
    %v448 = vadd.f32 %v444, 1e-05
    %v449 = vadd.f32 %v445, 1e-05
    %v450 = vrsqrt.pop %v448
    %v451 = vrsqrt.pop %v449
    %v452 = vmul.f32 %v446, %v450
    %v453 = vmul.f32 %v447, %v451
    %v454 = vmax.f32 %v452, 0.0
    %v455 = vmax.f32 %v453, 0.0
    %v456 = vld [vmem:[#allocation8] sm:$0xff]
    %v457 = vld [vmem:[#allocation8 + $0x8] sm:$0xff]
    %vm458 = vcmask 130048
    %v460 = vsel %vm458, %v456, 0
    %v463 = vsel %vm458, %v457, 0
    %465 = vmatprep.subr.mxu0 0.0
    %466 = vmatpush1.msra.mxu0 %v454
    %467 = vmatprep.subr.mxu0 0.0
    %468 = vmatpush1.msra.mxu0 %v455
    %469 = vmatprep.subr.mxu0 0.0
    %470 = vmatpush1.msra.mxu0 0.0
    %471 = vmatprep.subr.mxu0 0.0
    %472 = vmatpush1.msra.mxu0 0.0
    %473 = vmatprep.subr.mxu0 0.0
    %474 = vmatpush1.msra.mxu0 0.0
    %475 = vmatprep.subr.mxu0 0.0
    %476 = vmatpush1.msra.mxu0 0.0
    %477 = vmatprep.subr.mxu0 0.0
    %478 = vmatpush1.msra.mxu0 0.0
    %479 = vmatprep.subr.mxu0 0.0
    %480 = vmatpush1.msra.mxu0 0.0
    %481 = vmatprep.subr.mxu0 0.0
    %482 = vmatpush1.msra.mxu0 0.0
    %483 = vmatprep.subr.mxu0 0.0
    %484 = vmatpush1.msra.mxu0 0.0
    %485 = vmatprep.subr.mxu0 0.0
    %486 = vmatpush1.msra.mxu0 0.0
    %487 = vmatprep.subr.mxu0 0.0
    %488 = vmatpush1.msra.mxu0 0.0
    %489 = vmatprep.subr.mxu0 0.0
    %490 = vmatpush1.msra.mxu0 0.0
    %491 = vmatprep.subr.mxu0 0.0
    %492 = vmatpush1.msra.mxu0 0.0
    %493 = vmatprep.subr.mxu0 0.0
    %494 = vmatpush1.msra.mxu0 0.0
    %495 = vmatprep.subr.mxu0 0.0
    %496 = vmatpush1.msra.mxu0 0.0
    %497 = vmatprep.subr.mxu0 0.0
    %498 = vmatpush1.msra.mxu0 0.0
    %499 = vmatprep.subr.mxu0 0.0
    %500 = vmatpush1.msra.mxu0 0.0
    %501 = vmatprep.subr.mxu0 0.0
    %502 = vmatpush1.msra.mxu0 0.0
    %503 = vmatprep.subr.mxu0 0.0
    %504 = vmatpush1.msra.mxu0 0.0
    %505 = vmatprep.subr.mxu0 0.0
    %506 = vmatpush1.msra.mxu0 0.0
    %507 = vmatprep.subr.mxu0 0.0
    %508 = vmatpush1.msra.mxu0 0.0
    %509 = vmatprep.subr.mxu0 0.0
    %510 = vmatpush1.msra.mxu0 0.0
    %511 = vmatprep.subr.mxu0 0.0
    %512 = vmatpush1.msra.mxu0 0.0
    %513 = vmatprep.subr.mxu0 0.0
    %514 = vmatpush1.msra.mxu0 0.0
    %515 = vmatprep.subr.mxu0 0.0
    %516 = vmatpush1.msra.mxu0 0.0
    %517 = vmatprep.subr.mxu0 0.0
    %518 = vmatpush1.msra.mxu0 0.0
    %519 = vmatprep.subr.mxu0 0.0
    %520 = vmatpush1.msra.mxu0 0.0
    %521 = vmatprep.subr.mxu0 0.0
    %522 = vmatpush1.msra.mxu0 0.0
    %523 = vmatprep.subr.mxu0 0.0
    %524 = vmatpush1.msra.mxu0 0.0
    %525 = vmatprep.subr.mxu0 0.0
    %526 = vmatpush1.msra.mxu0 0.0
    %527 = vmatprep.subr.mxu0 0.0
    %528 = vmatpush1.msra.mxu0 0.0
    %529 = vmatprep.mubr.f32.mxu0 0.0
    %530 = vmatmul.mubr.f32.gmra.mrb[0].mxu0 %v460
    %v531 = vpop.f32.mrb[0].mxu0
    %v532 = vadd.f32 0.0, %v531
    %v533 = vpop.f32.mrb[0].mxu0
    %534 = vmatprep.mubr.f32.mxu0 0.0
    %535 = vmatmul.mubr.f32.gmra.mrb[0].mxu0 %v463
    %v536 = vpop.f32.mrb[0].mxu0
    %v537 = vadd.f32 0.0, %v536
    %v538 = vpop.f32.mrb[0].mxu0
    %539 = vdwg.mxu0
    %v540 = vsel %vm320, %v532, 0.0
    %541 = vadd.xlane.f32.xlu0 %v540
    %v542 = vpop.xlane.xlu0 %541
    %v543 = vsel %vm320, %v537, 0.0
    %544 = vadd.xlane.f32.xlu0 %v543
    %v545 = vpop.xlane.xlu0 %544
    %v546 = vmul.f32 %v532, %v532
    %v547 = vmul.f32 %v537, %v537
    %v548 = vsel %vm320, %v546, 0.0
    %549 = vadd.xlane.f32.xlu0 %v548
    %v550 = vpop.xlane.xlu0 %549
    %v551 = vsel %vm320, %v547, 0.0
    %552 = vadd.xlane.f32.xlu0 %v551
    %v553 = vpop.xlane.xlu0 %552
    %v554 = vmul.f32 %v542, 0.013888889
    %v555 = vmul.f32 %v545, 0.013888889
    %v556 = vmul.f32 %v550, 0.013888889
    %v557 = vmul.f32 %v553, 0.013888889
    %v558 = vmul.f32 %v554, %v554
    %v559 = vmul.f32 %v555, %v555
    %v560 = vsub.f32 %v556, %v558
    %v561 = vsub.f32 %v557, %v559
    %v562 = vmax.f32 %v560, 0.0
    %v563 = vmax.f32 %v561, 0.0
    %v564 = vsub.f32 %v532, %v554
    %v565 = vsub.f32 %v537, %v555
    %v566 = vadd.f32 %v562, 1e-05
    %v567 = vadd.f32 %v563, 1e-05
    %v568 = vrsqrt.pop %v566
    %v569 = vrsqrt.pop %v567
    %v570 = vmul.f32 %v564, %v568
    %v571 = vmul.f32 %v565, %v569
    %v572 = vmax.f32 %v570, 0.0
    %v573 = vmax.f32 %v571, 0.0
    %v574 = vld [vmem:[#allocation10] sm:$0xff]
    %v575 = vld [vmem:[#allocation10 + $0x8] sm:$0xff]
    %v577 = vsel %vm458, %v574, 0
    %v580 = vsel %vm458, %v575, 0
    %582 = vmatprep.subr.mxu0 0.0
    %583 = vmatpush1.msra.mxu0 %v572
    %584 = vmatprep.subr.mxu0 0.0
    %585 = vmatpush1.msra.mxu0 %v573
    %586 = vmatprep.subr.mxu0 0.0
    %587 = vmatpush1.msra.mxu0 0.0
    %588 = vmatprep.subr.mxu0 0.0
    %589 = vmatpush1.msra.mxu0 0.0
    %590 = vmatprep.subr.mxu0 0.0
    %591 = vmatpush1.msra.mxu0 0.0
    %592 = vmatprep.subr.mxu0 0.0
    %593 = vmatpush1.msra.mxu0 0.0
    %594 = vmatprep.subr.mxu0 0.0
    %595 = vmatpush1.msra.mxu0 0.0
    %596 = vmatprep.subr.mxu0 0.0
    %597 = vmatpush1.msra.mxu0 0.0
    %598 = vmatprep.subr.mxu0 0.0
    %599 = vmatpush1.msra.mxu0 0.0
    %600 = vmatprep.subr.mxu0 0.0
    %601 = vmatpush1.msra.mxu0 0.0
    %602 = vmatprep.subr.mxu0 0.0
    %603 = vmatpush1.msra.mxu0 0.0
    %604 = vmatprep.subr.mxu0 0.0
    %605 = vmatpush1.msra.mxu0 0.0
    %606 = vmatprep.subr.mxu0 0.0
    %607 = vmatpush1.msra.mxu0 0.0
    %608 = vmatprep.subr.mxu0 0.0
    %609 = vmatpush1.msra.mxu0 0.0
    %610 = vmatprep.subr.mxu0 0.0
    %611 = vmatpush1.msra.mxu0 0.0
    %612 = vmatprep.subr.mxu0 0.0
    %613 = vmatpush1.msra.mxu0 0.0
    %614 = vmatprep.subr.mxu0 0.0
    %615 = vmatpush1.msra.mxu0 0.0
    %616 = vmatprep.subr.mxu0 0.0
    %617 = vmatpush1.msra.mxu0 0.0
    %618 = vmatprep.subr.mxu0 0.0
    %619 = vmatpush1.msra.mxu0 0.0
    %620 = vmatprep.subr.mxu0 0.0
    %621 = vmatpush1.msra.mxu0 0.0
    %622 = vmatprep.subr.mxu0 0.0
    %623 = vmatpush1.msra.mxu0 0.0
    %624 = vmatprep.subr.mxu0 0.0
    %625 = vmatpush1.msra.mxu0 0.0
    %626 = vmatprep.subr.mxu0 0.0
    %627 = vmatpush1.msra.mxu0 0.0
    %628 = vmatprep.subr.mxu0 0.0
    %629 = vmatpush1.msra.mxu0 0.0
    %630 = vmatprep.subr.mxu0 0.0
    %631 = vmatpush1.msra.mxu0 0.0
    %632 = vmatprep.subr.mxu0 0.0
    %633 = vmatpush1.msra.mxu0 0.0
    %634 = vmatprep.subr.mxu0 0.0
    %635 = vmatpush1.msra.mxu0 0.0
    %636 = vmatprep.subr.mxu0 0.0
    %637 = vmatpush1.msra.mxu0 0.0
    %638 = vmatprep.subr.mxu0 0.0
    %639 = vmatpush1.msra.mxu0 0.0
    %640 = vmatprep.subr.mxu0 0.0
    %641 = vmatpush1.msra.mxu0 0.0
    %642 = vmatprep.subr.mxu0 0.0
    %643 = vmatpush1.msra.mxu0 0.0
    %644 = vmatprep.subr.mxu0 0.0
    %645 = vmatpush1.msra.mxu0 0.0
    %646 = vmatprep.mubr.f32.mxu0 0.0
    %647 = vmatmul.mubr.f32.gmra.mrb[0].mxu0 %v577
    %v648 = vpop.f32.mrb[0].mxu0
    %v649 = vadd.f32 0.0, %v648
    %v650 = vpop.f32.mrb[0].mxu0
    %651 = vmatprep.mubr.f32.mxu0 0.0
    %652 = vmatmul.mubr.f32.gmra.mrb[0].mxu0 %v580
    %v653 = vpop.f32.mrb[0].mxu0
    %v654 = vadd.f32 0.0, %v653
    %v655 = vpop.f32.mrb[0].mxu0
    %656 = vdwg.mxu0
    %v657 = vsel %vm320, %v649, 0.0
    %658 = vadd.xlane.f32.xlu0 %v657
    %v659 = vpop.xlane.xlu0 %658
    %v660 = vsel %vm320, %v654, 0.0
    %661 = vadd.xlane.f32.xlu0 %v660
    %v662 = vpop.xlane.xlu0 %661
    %v663 = vmul.f32 %v649, %v649
    %v664 = vmul.f32 %v654, %v654
    %v665 = vsel %vm320, %v663, 0.0
    %666 = vadd.xlane.f32.xlu0 %v665
    %v667 = vpop.xlane.xlu0 %666
    %v668 = vsel %vm320, %v664, 0.0
    %669 = vadd.xlane.f32.xlu0 %v668
    %v670 = vpop.xlane.xlu0 %669
    %v671 = vmul.f32 %v659, 0.013888889
    %v672 = vmul.f32 %v662, 0.013888889
    %v673 = vmul.f32 %v667, 0.013888889
    %v674 = vmul.f32 %v670, 0.013888889
    %v675 = vmul.f32 %v671, %v671
    %v676 = vmul.f32 %v672, %v672
    %v677 = vsub.f32 %v673, %v675
    %v678 = vsub.f32 %v674, %v676
    %v679 = vmax.f32 %v677, 0.0
    %v680 = vmax.f32 %v678, 0.0
    %v681 = vsub.f32 %v649, %v671
    %v682 = vsub.f32 %v654, %v672
    %v683 = vadd.f32 %v679, 1e-05
    %v684 = vadd.f32 %v680, 1e-05
    %v685 = vrsqrt.pop %v683
    %v686 = vrsqrt.pop %v684
    %v687 = vmul.f32 %v681, %v685
    %v688 = vmul.f32 %v682, %v686
    %v689 = vmax.f32 %v687, 0.0
    %v690 = vmax.f32 %v688, 0.0
    %v691 = vld [vmem:[#allocation11] sm:$0xff]
    %v692 = vld [vmem:[#allocation11 + $0x8] sm:$0xff]
    %v693 = vld [vmem:[#allocation13] sm:$0xff]
    %v694 = vld [vmem:[#allocation13 + $0x8] sm:$0xff]
    %v696 = vsel %vm458, %v693, 0
    %v699 = vsel %vm458, %v694, 0
    %701 = vmatprep.subr.mxu0 0.0
    %702 = vmatpush1.msra.mxu0 %v689
    %703 = vmatprep.subr.mxu0 0.0
    %704 = vmatpush1.msra.mxu0 %v690
    %705 = vmatprep.subr.mxu0 0.0
    %706 = vmatpush1.msra.mxu0 0.0
    %707 = vmatprep.subr.mxu0 0.0
    %708 = vmatpush1.msra.mxu0 0.0
    %709 = vmatprep.subr.mxu0 0.0
    %710 = vmatpush1.msra.mxu0 0.0
    %711 = vmatprep.subr.mxu0 0.0
    %712 = vmatpush1.msra.mxu0 0.0
    %713 = vmatprep.subr.mxu0 0.0
    %714 = vmatpush1.msra.mxu0 0.0
    %715 = vmatprep.subr.mxu0 0.0
    %716 = vmatpush1.msra.mxu0 0.0
    %717 = vmatprep.subr.mxu0 0.0
    %718 = vmatpush1.msra.mxu0 0.0
    %719 = vmatprep.subr.mxu0 0.0
    %720 = vmatpush1.msra.mxu0 0.0
    %721 = vmatprep.subr.mxu0 0.0
    %722 = vmatpush1.msra.mxu0 0.0
    %723 = vmatprep.subr.mxu0 0.0
    %724 = vmatpush1.msra.mxu0 0.0
    %725 = vmatprep.subr.mxu0 0.0
    %726 = vmatpush1.msra.mxu0 0.0
    %727 = vmatprep.subr.mxu0 0.0
    %728 = vmatpush1.msra.mxu0 0.0
    %729 = vmatprep.subr.mxu0 0.0
    %730 = vmatpush1.msra.mxu0 0.0
    %731 = vmatprep.subr.mxu0 0.0
    %732 = vmatpush1.msra.mxu0 0.0
    %733 = vmatprep.subr.mxu0 0.0
    %734 = vmatpush1.msra.mxu0 0.0
    %735 = vmatprep.subr.mxu0 0.0
    %736 = vmatpush1.msra.mxu0 0.0
    %737 = vmatprep.subr.mxu0 0.0
    %738 = vmatpush1.msra.mxu0 0.0
    %739 = vmatprep.subr.mxu0 0.0
    %740 = vmatpush1.msra.mxu0 0.0
    %741 = vmatprep.subr.mxu0 0.0
    %742 = vmatpush1.msra.mxu0 0.0
    %743 = vmatprep.subr.mxu0 0.0
    %744 = vmatpush1.msra.mxu0 0.0
    %745 = vmatprep.subr.mxu0 0.0
    %746 = vmatpush1.msra.mxu0 0.0
    %747 = vmatprep.subr.mxu0 0.0
    %748 = vmatpush1.msra.mxu0 0.0
    %749 = vmatprep.subr.mxu0 0.0
    %750 = vmatpush1.msra.mxu0 0.0
    %751 = vmatprep.subr.mxu0 0.0
    %752 = vmatpush1.msra.mxu0 0.0
    %753 = vmatprep.subr.mxu0 0.0
    %754 = vmatpush1.msra.mxu0 0.0
    %755 = vmatprep.subr.mxu0 0.0
    %756 = vmatpush1.msra.mxu0 0.0
    %757 = vmatprep.subr.mxu0 0.0
    %758 = vmatpush1.msra.mxu0 0.0
    %759 = vmatprep.subr.mxu0 0.0
    %760 = vmatpush1.msra.mxu0 0.0
    %761 = vmatprep.subr.mxu0 0.0
    %762 = vmatpush1.msra.mxu0 0.0
    %763 = vmatprep.subr.mxu0 0.0
    %764 = vmatpush1.msra.mxu0 0.0
    %765 = vmatprep.mubr.f32.mxu0 0.0
    %766 = vmatmul.mubr.f32.gmra.mrb[0].mxu0 %v696
    %v767 = vpop.f32.mrb[0].mxu0
    %v768 = vadd.f32 0.0, %v767
    %v769 = vpop.f32.mrb[0].mxu0
    %770 = vmatprep.mubr.f32.mxu0 0.0
    %771 = vmatmul.mubr.f32.gmra.mrb[0].mxu0 %v699
    %v772 = vpop.f32.mrb[0].mxu0
    %v773 = vadd.f32 0.0, %v772
    %v774 = vpop.f32.mrb[0].mxu0
    %775 = vdwg.mxu0
    %v777 = vsel %vm458, %v691, 0
    %v780 = vsel %vm458, %v692, 0
    %782 = vmatprep.subr.mxu0 0.0
    %783 = vmatpush1.msra.mxu0 %v454
    %784 = vmatprep.subr.mxu0 0.0
    %785 = vmatpush1.msra.mxu0 %v455
    %786 = vmatprep.subr.mxu0 0.0
    %787 = vmatpush1.msra.mxu0 0.0
    %788 = vmatprep.subr.mxu0 0.0
    %789 = vmatpush1.msra.mxu0 0.0
    %790 = vmatprep.subr.mxu0 0.0
    %791 = vmatpush1.msra.mxu0 0.0
    %792 = vmatprep.subr.mxu0 0.0
    %793 = vmatpush1.msra.mxu0 0.0
    %794 = vmatprep.subr.mxu0 0.0
    %795 = vmatpush1.msra.mxu0 0.0
    %796 = vmatprep.subr.mxu0 0.0
    %797 = vmatpush1.msra.mxu0 0.0
    %798 = vmatprep.subr.mxu0 0.0
    %799 = vmatpush1.msra.mxu0 0.0
    %800 = vmatprep.subr.mxu0 0.0
    %801 = vmatpush1.msra.mxu0 0.0
    %802 = vmatprep.subr.mxu0 0.0
    %803 = vmatpush1.msra.mxu0 0.0
    %804 = vmatprep.subr.mxu0 0.0
    %805 = vmatpush1.msra.mxu0 0.0
    %806 = vmatprep.subr.mxu0 0.0
    %807 = vmatpush1.msra.mxu0 0.0
    %808 = vmatprep.subr.mxu0 0.0
    %809 = vmatpush1.msra.mxu0 0.0
    %810 = vmatprep.subr.mxu0 0.0
    %811 = vmatpush1.msra.mxu0 0.0
    %812 = vmatprep.subr.mxu0 0.0
    %813 = vmatpush1.msra.mxu0 0.0
    %814 = vmatprep.subr.mxu0 0.0
    %815 = vmatpush1.msra.mxu0 0.0
    %816 = vmatprep.subr.mxu0 0.0
    %817 = vmatpush1.msra.mxu0 0.0
    %818 = vmatprep.subr.mxu0 0.0
    %819 = vmatpush1.msra.mxu0 0.0
    %820 = vmatprep.subr.mxu0 0.0
    %821 = vmatpush1.msra.mxu0 0.0
    %822 = vmatprep.subr.mxu0 0.0
    %823 = vmatpush1.msra.mxu0 0.0
    %824 = vmatprep.subr.mxu0 0.0
    %825 = vmatpush1.msra.mxu0 0.0
    %826 = vmatprep.subr.mxu0 0.0
    %827 = vmatpush1.msra.mxu0 0.0
    %828 = vmatprep.subr.mxu0 0.0
    %829 = vmatpush1.msra.mxu0 0.0
    %830 = vmatprep.subr.mxu0 0.0
    %831 = vmatpush1.msra.mxu0 0.0
    %832 = vmatprep.subr.mxu0 0.0
    %833 = vmatpush1.msra.mxu0 0.0
    %834 = vmatprep.subr.mxu0 0.0
    %835 = vmatpush1.msra.mxu0 0.0
    %836 = vmatprep.subr.mxu0 0.0
    %837 = vmatpush1.msra.mxu0 0.0
    %838 = vmatprep.subr.mxu0 0.0
    %839 = vmatpush1.msra.mxu0 0.0
    %840 = vmatprep.subr.mxu0 0.0
    %841 = vmatpush1.msra.mxu0 0.0
    %842 = vmatprep.subr.mxu0 0.0
    %843 = vmatpush1.msra.mxu0 0.0
    %844 = vmatprep.subr.mxu0 0.0
    %845 = vmatpush1.msra.mxu0 0.0
    %846 = vmatprep.mubr.f32.mxu0 0.0
    %847 = vmatmul.mubr.f32.gmra.mrb[0].mxu0 %v777
    %v848 = vpop.f32.mrb[0].mxu0
    %v849 = vadd.f32 %v768, %v848
    %v850 = vpop.f32.mrb[0].mxu0
    %851 = vmatprep.mubr.f32.mxu0 0.0
    %852 = vmatmul.mubr.f32.gmra.mrb[0].mxu0 %v780
    %v853 = vpop.f32.mrb[0].mxu0
    %v854 = vadd.f32 %v773, %v853
    %v855 = vpop.f32.mrb[0].mxu0
    %856 = vdwg.mxu0
    %v857 = vsel %vm320, %v849, 0.0
    %858 = vadd.xlane.f32.xlu0 %v857
    %v859 = vpop.xlane.xlu0 %858
    %v860 = vsel %vm320, %v854, 0.0
    %861 = vadd.xlane.f32.xlu0 %v860
    %v862 = vpop.xlane.xlu0 %861
    %v863 = vmul.f32 %v849, %v849
    %v864 = vmul.f32 %v854, %v854
    %v865 = vsel %vm320, %v863, 0.0
    %866 = vadd.xlane.f32.xlu0 %v865
    %v867 = vpop.xlane.xlu0 %866
    %v868 = vsel %vm320, %v864, 0.0
    %869 = vadd.xlane.f32.xlu0 %v868
    %v870 = vpop.xlane.xlu0 %869
    %v871 = vmul.f32 %v859, 0.013888889
    %v872 = vmul.f32 %v862, 0.013888889
    %v873 = vmul.f32 %v867, 0.013888889
    %v874 = vmul.f32 %v870, 0.013888889
    %v875 = vmul.f32 %v871, %v871
    %v876 = vmul.f32 %v872, %v872
    %v877 = vsub.f32 %v873, %v875
    %v878 = vsub.f32 %v874, %v876
    %v879 = vmax.f32 %v877, 0.0
    %v880 = vmax.f32 %v878, 0.0
    %v881 = vsub.f32 %v849, %v871
    %v882 = vsub.f32 %v854, %v872
    %v883 = vadd.f32 %v879, 1e-05
    %v884 = vadd.f32 %v880, 1e-05
    %v885 = vrsqrt.pop %v883
    %v886 = vrsqrt.pop %v884
    %v887 = vmul.f32 %v881, %v885
    %v888 = vmul.f32 %v882, %v886
    %v889 = vmax.f32 %v887, 0.0
    %v890 = vmax.f32 %v888, 0.0
    %v891 = vld [vmem:[#allocation14] sm:$0xff]
    %v892 = vld [vmem:[#allocation14 + $0x8] sm:$0xff]
    %v894 = vsel %vm458, %v891, 0
    %v897 = vsel %vm458, %v892, 0
    %899 = vmatprep.subr.mxu0 0.0
    %900 = vmatpush1.msra.mxu0 %v889
    %901 = vmatprep.subr.mxu0 0.0
    %902 = vmatpush1.msra.mxu0 %v890
    %903 = vmatprep.subr.mxu0 0.0
    %904 = vmatpush1.msra.mxu0 0.0
    %905 = vmatprep.subr.mxu0 0.0
    %906 = vmatpush1.msra.mxu0 0.0
    %907 = vmatprep.subr.mxu0 0.0
    %908 = vmatpush1.msra.mxu0 0.0
    %909 = vmatprep.subr.mxu0 0.0
    %910 = vmatpush1.msra.mxu0 0.0
    %911 = vmatprep.subr.mxu0 0.0
    %912 = vmatpush1.msra.mxu0 0.0
    %913 = vmatprep.subr.mxu0 0.0
    %914 = vmatpush1.msra.mxu0 0.0
    %915 = vmatprep.subr.mxu0 0.0
    %916 = vmatpush1.msra.mxu0 0.0
    %917 = vmatprep.subr.mxu0 0.0
    %918 = vmatpush1.msra.mxu0 0.0
    %919 = vmatprep.subr.mxu0 0.0
    %920 = vmatpush1.msra.mxu0 0.0
    %921 = vmatprep.subr.mxu0 0.0
    %922 = vmatpush1.msra.mxu0 0.0
    %923 = vmatprep.subr.mxu0 0.0
    %924 = vmatpush1.msra.mxu0 0.0
    %925 = vmatprep.subr.mxu0 0.0
    %926 = vmatpush1.msra.mxu0 0.0
    %927 = vmatprep.subr.mxu0 0.0
    %928 = vmatpush1.msra.mxu0 0.0
    %929 = vmatprep.subr.mxu0 0.0
    %930 = vmatpush1.msra.mxu0 0.0
    %931 = vmatprep.subr.mxu0 0.0
    %932 = vmatpush1.msra.mxu0 0.0
    %933 = vmatprep.subr.mxu0 0.0
    %934 = vmatpush1.msra.mxu0 0.0
    %935 = vmatprep.subr.mxu0 0.0
    %936 = vmatpush1.msra.mxu0 0.0
    %937 = vmatprep.subr.mxu0 0.0
    %938 = vmatpush1.msra.mxu0 0.0
    %939 = vmatprep.subr.mxu0 0.0
    %940 = vmatpush1.msra.mxu0 0.0
    %941 = vmatprep.subr.mxu0 0.0
    %942 = vmatpush1.msra.mxu0 0.0
    %943 = vmatprep.subr.mxu0 0.0
    %944 = vmatpush1.msra.mxu0 0.0
    %945 = vmatprep.subr.mxu0 0.0
    %946 = vmatpush1.msra.mxu0 0.0
    %947 = vmatprep.subr.mxu0 0.0
    %948 = vmatpush1.msra.mxu0 0.0
    %949 = vmatprep.subr.mxu0 0.0
    %950 = vmatpush1.msra.mxu0 0.0
    %951 = vmatprep.subr.mxu0 0.0
    %952 = vmatpush1.msra.mxu0 0.0
    %953 = vmatprep.subr.mxu0 0.0
    %954 = vmatpush1.msra.mxu0 0.0
    %955 = vmatprep.subr.mxu0 0.0
    %956 = vmatpush1.msra.mxu0 0.0
    %957 = vmatprep.subr.mxu0 0.0
    %958 = vmatpush1.msra.mxu0 0.0
    %959 = vmatprep.subr.mxu0 0.0
    %960 = vmatpush1.msra.mxu0 0.0
    %961 = vmatprep.subr.mxu0 0.0
    %962 = vmatpush1.msra.mxu0 0.0
    %963 = vmatprep.mubr.f32.mxu0 0.0
    %964 = vmatmul.mubr.f32.gmra.mrb[0].mxu0 %v894
    %v965 = vpop.f32.mrb[0].mxu0
    %v966 = vadd.f32 0.0, %v965
    %v967 = vpop.f32.mrb[0].mxu0
    %968 = vmatprep.mubr.f32.mxu0 0.0
    %969 = vmatmul.mubr.f32.gmra.mrb[0].mxu0 %v897
    %v970 = vpop.f32.mrb[0].mxu0
    %v971 = vadd.f32 0.0, %v970
    %v972 = vpop.f32.mrb[0].mxu0
    %973 = vdwg.mxu0
    %v974 = vsel %vm320, %v966, 0.0
    %975 = vadd.xlane.f32.xlu0 %v974
    %v976 = vpop.xlane.xlu0 %975
    %v977 = vsel %vm320, %v971, 0.0
    %978 = vadd.xlane.f32.xlu0 %v977
    %v979 = vpop.xlane.xlu0 %978
    %v980 = vmul.f32 %v966, %v966
    %v981 = vmul.f32 %v971, %v971
    %v982 = vsel %vm320, %v980, 0.0
    %983 = vadd.xlane.f32.xlu0 %v982
    %v984 = vpop.xlane.xlu0 %983
    %v985 = vsel %vm320, %v981, 0.0
    %986 = vadd.xlane.f32.xlu0 %v985
    %v987 = vpop.xlane.xlu0 %986
    %v988 = vmul.f32 %v976, 0.013888889
    %v989 = vmul.f32 %v979, 0.013888889
    %v990 = vmul.f32 %v984, 0.013888889
    %v991 = vmul.f32 %v987, 0.013888889
    %v992 = vmul.f32 %v988, %v988
    %v993 = vmul.f32 %v989, %v989
    %v994 = vsub.f32 %v990, %v992
    %v995 = vsub.f32 %v991, %v993
    %v996 = vmax.f32 %v994, 0.0
    %v997 = vmax.f32 %v995, 0.0
    %v998 = vsub.f32 %v966, %v988
    %v999 = vsub.f32 %v971, %v989
    %v1000 = vadd.f32 %v996, 1e-05
    %v1001 = vadd.f32 %v997, 1e-05
    %v1002 = vrsqrt.pop %v1000
    %v1003 = vrsqrt.pop %v1001
    %v1004 = vmul.f32 %v998, %v1002
    %v1005 = vmul.f32 %v999, %v1003
    %v1006 = vmax.f32 %v1004, 0.0
    %v1007 = vmax.f32 %v1005, 0.0
    %v1008 = vld [vmem:[#allocation16] sm:$0xff]
    %v1009 = vld [vmem:[#allocation16 + $0x8] sm:$0xff]
    %v1010 = vld [vmem:[#allocation17] sm:$0xff]
    %v1011 = vld [vmem:[#allocation17 + $0x8] sm:$0xff]
    %v1013 = vsel %vm458, %v1010, 0
    %v1016 = vsel %vm458, %v1011, 0
    %1018 = vmatprep.subr.mxu0 0.0
    %1019 = vmatpush1.msra.mxu0 %v689
    %1020 = vmatprep.subr.mxu0 0.0
    %1021 = vmatpush1.msra.mxu0 %v690
    %1022 = vmatprep.subr.mxu0 0.0
    %1023 = vmatpush1.msra.mxu0 0.0
    %1024 = vmatprep.subr.mxu0 0.0
    %1025 = vmatpush1.msra.mxu0 0.0
    %1026 = vmatprep.subr.mxu0 0.0
    %1027 = vmatpush1.msra.mxu0 0.0
    %1028 = vmatprep.subr.mxu0 0.0
    %1029 = vmatpush1.msra.mxu0 0.0
    %1030 = vmatprep.subr.mxu0 0.0
    %1031 = vmatpush1.msra.mxu0 0.0
    %1032 = vmatprep.subr.mxu0 0.0
    %1033 = vmatpush1.msra.mxu0 0.0
    %1034 = vmatprep.subr.mxu0 0.0
    %1035 = vmatpush1.msra.mxu0 0.0
    %1036 = vmatprep.subr.mxu0 0.0
    %1037 = vmatpush1.msra.mxu0 0.0
    %1038 = vmatprep.subr.mxu0 0.0
    %1039 = vmatpush1.msra.mxu0 0.0
    %1040 = vmatprep.subr.mxu0 0.0
    %1041 = vmatpush1.msra.mxu0 0.0
    %1042 = vmatprep.subr.mxu0 0.0
    %1043 = vmatpush1.msra.mxu0 0.0
    %1044 = vmatprep.subr.mxu0 0.0
    %1045 = vmatpush1.msra.mxu0 0.0
    %1046 = vmatprep.subr.mxu0 0.0
    %1047 = vmatpush1.msra.mxu0 0.0
    %1048 = vmatprep.subr.mxu0 0.0
    %1049 = vmatpush1.msra.mxu0 0.0
    %1050 = vmatprep.subr.mxu0 0.0
    %1051 = vmatpush1.msra.mxu0 0.0
    %1052 = vmatprep.subr.mxu0 0.0
    %1053 = vmatpush1.msra.mxu0 0.0
    %1054 = vmatprep.subr.mxu0 0.0
    %1055 = vmatpush1.msra.mxu0 0.0
    %1056 = vmatprep.subr.mxu0 0.0
    %1057 = vmatpush1.msra.mxu0 0.0
    %1058 = vmatprep.subr.mxu0 0.0
    %1059 = vmatpush1.msra.mxu0 0.0
    %1060 = vmatprep.subr.mxu0 0.0
    %1061 = vmatpush1.msra.mxu0 0.0
    %1062 = vmatprep.subr.mxu0 0.0
    %1063 = vmatpush1.msra.mxu0 0.0
    %1064 = vmatprep.subr.mxu0 0.0
    %1065 = vmatpush1.msra.mxu0 0.0
    %1066 = vmatprep.subr.mxu0 0.0
    %1067 = vmatpush1.msra.mxu0 0.0
    %1068 = vmatprep.subr.mxu0 0.0
    %1069 = vmatpush1.msra.mxu0 0.0
    %1070 = vmatprep.subr.mxu0 0.0
    %1071 = vmatpush1.msra.mxu0 0.0
    %1072 = vmatprep.subr.mxu0 0.0
    %1073 = vmatpush1.msra.mxu0 0.0
    %1074 = vmatprep.subr.mxu0 0.0
    %1075 = vmatpush1.msra.mxu0 0.0
    %1076 = vmatprep.subr.mxu0 0.0
    %1077 = vmatpush1.msra.mxu0 0.0
    %1078 = vmatprep.subr.mxu0 0.0
    %1079 = vmatpush1.msra.mxu0 0.0
    %1080 = vmatprep.subr.mxu0 0.0
    %1081 = vmatpush1.msra.mxu0 0.0
    %1082 = vmatprep.mubr.f32.mxu0 0.0
    %1083 = vmatmul.mubr.f32.gmra.mrb[0].mxu0 %v1013
    %v1084 = vpop.f32.mrb[0].mxu0
    %v1085 = vadd.f32 0.0, %v1084
    %v1086 = vpop.f32.mrb[0].mxu0
    %1087 = vmatprep.mubr.f32.mxu0 0.0
    %1088 = vmatmul.mubr.f32.gmra.mrb[0].mxu0 %v1016
    %v1089 = vpop.f32.mrb[0].mxu0
    %v1090 = vadd.f32 0.0, %v1089
    %v1091 = vpop.f32.mrb[0].mxu0
    %1092 = vdwg.mxu0
    %v1094 = vsel %vm458, %v1008, 0
    %v1097 = vsel %vm458, %v1009, 0
    %1099 = vmatprep.subr.mxu0 0.0
    %1100 = vmatpush1.msra.mxu0 %v454
    %1101 = vmatprep.subr.mxu0 0.0
    %1102 = vmatpush1.msra.mxu0 %v455
    %1103 = vmatprep.subr.mxu0 0.0
    %1104 = vmatpush1.msra.mxu0 0.0
    %1105 = vmatprep.subr.mxu0 0.0
    %1106 = vmatpush1.msra.mxu0 0.0
    %1107 = vmatprep.subr.mxu0 0.0
    %1108 = vmatpush1.msra.mxu0 0.0
    %1109 = vmatprep.subr.mxu0 0.0
    %1110 = vmatpush1.msra.mxu0 0.0
    %1111 = vmatprep.subr.mxu0 0.0
    %1112 = vmatpush1.msra.mxu0 0.0
    %1113 = vmatprep.subr.mxu0 0.0
    %1114 = vmatpush1.msra.mxu0 0.0
    %1115 = vmatprep.subr.mxu0 0.0
    %1116 = vmatpush1.msra.mxu0 0.0
    %1117 = vmatprep.subr.mxu0 0.0
    %1118 = vmatpush1.msra.mxu0 0.0
    %1119 = vmatprep.subr.mxu0 0.0
    %1120 = vmatpush1.msra.mxu0 0.0
    %1121 = vmatprep.subr.mxu0 0.0
    %1122 = vmatpush1.msra.mxu0 0.0
    %1123 = vmatprep.subr.mxu0 0.0
    %1124 = vmatpush1.msra.mxu0 0.0
    %1125 = vmatprep.subr.mxu0 0.0
    %1126 = vmatpush1.msra.mxu0 0.0
    %1127 = vmatprep.subr.mxu0 0.0
    %1128 = vmatpush1.msra.mxu0 0.0
    %1129 = vmatprep.subr.mxu0 0.0
    %1130 = vmatpush1.msra.mxu0 0.0
    %1131 = vmatprep.subr.mxu0 0.0
    %1132 = vmatpush1.msra.mxu0 0.0
    %1133 = vmatprep.subr.mxu0 0.0
    %1134 = vmatpush1.msra.mxu0 0.0
    %1135 = vmatprep.subr.mxu0 0.0
    %1136 = vmatpush1.msra.mxu0 0.0
    %1137 = vmatprep.subr.mxu0 0.0
    %1138 = vmatpush1.msra.mxu0 0.0
    %1139 = vmatprep.subr.mxu0 0.0
    %1140 = vmatpush1.msra.mxu0 0.0
    %1141 = vmatprep.subr.mxu0 0.0
    %1142 = vmatpush1.msra.mxu0 0.0
    %1143 = vmatprep.subr.mxu0 0.0
    %1144 = vmatpush1.msra.mxu0 0.0
    %1145 = vmatprep.subr.mxu0 0.0
    %1146 = vmatpush1.msra.mxu0 0.0
    %1147 = vmatprep.subr.mxu0 0.0
    %1148 = vmatpush1.msra.mxu0 0.0
    %1149 = vmatprep.subr.mxu0 0.0
    %1150 = vmatpush1.msra.mxu0 0.0
    %1151 = vmatprep.subr.mxu0 0.0
    %1152 = vmatpush1.msra.mxu0 0.0
    %1153 = vmatprep.subr.mxu0 0.0
    %1154 = vmatpush1.msra.mxu0 0.0
    %1155 = vmatprep.subr.mxu0 0.0
    %1156 = vmatpush1.msra.mxu0 0.0
    %1157 = vmatprep.subr.mxu0 0.0
    %1158 = vmatpush1.msra.mxu0 0.0
    %1159 = vmatprep.subr.mxu0 0.0
    %1160 = vmatpush1.msra.mxu0 0.0
    %1161 = vmatprep.subr.mxu0 0.0
    %1162 = vmatpush1.msra.mxu0 0.0
    %1163 = vmatprep.mubr.f32.mxu0 0.0
    %1164 = vmatmul.mubr.f32.gmra.mrb[0].mxu0 %v1094
    %v1165 = vpop.f32.mrb[0].mxu0
    %v1166 = vadd.f32 %v1085, %v1165
    %v1167 = vpop.f32.mrb[0].mxu0
    %1168 = vmatprep.mubr.f32.mxu0 0.0
    %1169 = vmatmul.mubr.f32.gmra.mrb[0].mxu0 %v1097
    %v1170 = vpop.f32.mrb[0].mxu0
    %v1171 = vadd.f32 %v1090, %v1170
    %v1172 = vpop.f32.mrb[0].mxu0
    %1173 = vdwg.mxu0
    %v1174 = vld [vmem:[#allocation19] sm:$0xff]
    %v1175 = vld [vmem:[#allocation19 + $0x8] sm:$0xff]
    %v1177 = vsel %vm458, %v1174, 0
    %v1180 = vsel %vm458, %v1175, 0
    %1182 = vmatprep.subr.mxu0 0.0
    %1183 = vmatpush1.msra.mxu0 %v1006
    %1184 = vmatprep.subr.mxu0 0.0
    %1185 = vmatpush1.msra.mxu0 %v1007
    %1186 = vmatprep.subr.mxu0 0.0
    %1187 = vmatpush1.msra.mxu0 0.0
    %1188 = vmatprep.subr.mxu0 0.0
    %1189 = vmatpush1.msra.mxu0 0.0
    %1190 = vmatprep.subr.mxu0 0.0
    %1191 = vmatpush1.msra.mxu0 0.0
    %1192 = vmatprep.subr.mxu0 0.0
    %1193 = vmatpush1.msra.mxu0 0.0
    %1194 = vmatprep.subr.mxu0 0.0
    %1195 = vmatpush1.msra.mxu0 0.0
    %1196 = vmatprep.subr.mxu0 0.0
    %1197 = vmatpush1.msra.mxu0 0.0
    %1198 = vmatprep.subr.mxu0 0.0
    %1199 = vmatpush1.msra.mxu0 0.0
    %1200 = vmatprep.subr.mxu0 0.0
    %1201 = vmatpush1.msra.mxu0 0.0
    %1202 = vmatprep.subr.mxu0 0.0
    %1203 = vmatpush1.msra.mxu0 0.0
    %1204 = vmatprep.subr.mxu0 0.0
    %1205 = vmatpush1.msra.mxu0 0.0
    %1206 = vmatprep.subr.mxu0 0.0
    %1207 = vmatpush1.msra.mxu0 0.0
    %1208 = vmatprep.subr.mxu0 0.0
    %1209 = vmatpush1.msra.mxu0 0.0
    %1210 = vmatprep.subr.mxu0 0.0
    %1211 = vmatpush1.msra.mxu0 0.0
    %1212 = vmatprep.subr.mxu0 0.0
    %1213 = vmatpush1.msra.mxu0 0.0
    %1214 = vmatprep.subr.mxu0 0.0
    %1215 = vmatpush1.msra.mxu0 0.0
    %1216 = vmatprep.subr.mxu0 0.0
    %1217 = vmatpush1.msra.mxu0 0.0
    %1218 = vmatprep.subr.mxu0 0.0
    %1219 = vmatpush1.msra.mxu0 0.0
    %1220 = vmatprep.subr.mxu0 0.0
    %1221 = vmatpush1.msra.mxu0 0.0
    %1222 = vmatprep.subr.mxu0 0.0
    %1223 = vmatpush1.msra.mxu0 0.0
    %1224 = vmatprep.subr.mxu0 0.0
    %1225 = vmatpush1.msra.mxu0 0.0
    %1226 = vmatprep.subr.mxu0 0.0
    %1227 = vmatpush1.msra.mxu0 0.0
    %1228 = vmatprep.subr.mxu0 0.0
    %1229 = vmatpush1.msra.mxu0 0.0
    %1230 = vmatprep.subr.mxu0 0.0
    %1231 = vmatpush1.msra.mxu0 0.0
    %1232 = vmatprep.subr.mxu0 0.0
    %1233 = vmatpush1.msra.mxu0 0.0
    %1234 = vmatprep.subr.mxu0 0.0
    %1235 = vmatpush1.msra.mxu0 0.0
    %1236 = vmatprep.subr.mxu0 0.0
    %1237 = vmatpush1.msra.mxu0 0.0
    %1238 = vmatprep.subr.mxu0 0.0
    %1239 = vmatpush1.msra.mxu0 0.0
    %1240 = vmatprep.subr.mxu0 0.0
    %1241 = vmatpush1.msra.mxu0 0.0
    %1242 = vmatprep.subr.mxu0 0.0
    %1243 = vmatpush1.msra.mxu0 0.0
    %1244 = vmatprep.subr.mxu0 0.0
    %1245 = vmatpush1.msra.mxu0 0.0
    %1246 = vmatprep.mubr.f32.mxu0 0.0
    %1247 = vmatmul.mubr.f32.gmra.mrb[0].mxu0 %v1177
    %v1248 = vpop.f32.mrb[0].mxu0
    %v1249 = vadd.f32 0.0, %v1248
    %v1250 = vpop.f32.mrb[0].mxu0
    %1251 = vmatprep.mubr.f32.mxu0 0.0
    %1252 = vmatmul.mubr.f32.gmra.mrb[0].mxu0 %v1180
    %v1253 = vpop.f32.mrb[0].mxu0
    %v1254 = vadd.f32 0.0, %v1253
    %v1255 = vpop.f32.mrb[0].mxu0
    %1256 = vdwg.mxu0
    %v1257 = vadd.f32 %v1166, %v1249
    %v1258 = vadd.f32 %v1171, %v1254
    %v1259 = vsel %vm320, %v1257, 0.0
    %1260 = vadd.xlane.f32.xlu0 %v1259
    %v1261 = vpop.xlane.xlu0 %1260
    %v1262 = vsel %vm320, %v1258, 0.0
    %1263 = vadd.xlane.f32.xlu0 %v1262
    %v1264 = vpop.xlane.xlu0 %1263
    %v1265 = vmul.f32 %v1257, %v1257
    %v1266 = vmul.f32 %v1258, %v1258
    %v1267 = vsel %vm320, %v1265, 0.0
    %1268 = vadd.xlane.f32.xlu0 %v1267
    %v1269 = vpop.xlane.xlu0 %1268
    %v1270 = vsel %vm320, %v1266, 0.0
    %1271 = vadd.xlane.f32.xlu0 %v1270
    %v1272 = vpop.xlane.xlu0 %1271
    %v1273 = vmul.f32 %v1261, 0.013888889
    %v1274 = vmul.f32 %v1264, 0.013888889
    %v1275 = vmul.f32 %v1269, 0.013888889
    %v1276 = vmul.f32 %v1272, 0.013888889
    %v1277 = vmul.f32 %v1273, %v1273
    %v1278 = vmul.f32 %v1274, %v1274
    %v1279 = vsub.f32 %v1275, %v1277
    %v1280 = vsub.f32 %v1276, %v1278
    %v1281 = vmax.f32 %v1279, 0.0
    %v1282 = vmax.f32 %v1280, 0.0
    %v1283 = vsub.f32 %v1257, %v1273
    %v1284 = vsub.f32 %v1258, %v1274
    %v1285 = vadd.f32 %v1281, 1e-05
    %v1286 = vadd.f32 %v1282, 1e-05
    %v1287 = vrsqrt.pop %v1285
    %v1288 = vrsqrt.pop %v1286
    %v1289 = vmul.f32 %v1283, %v1287
    %v1290 = vmul.f32 %v1284, %v1288
    %v1291 = vmax.f32 %v1289, 0.0
    %v1292 = vmax.f32 %v1290, 0.0
    %v1293 = vld [vmem:[#allocation20] sm:$0xff]
    %v1294 = vld [vmem:[#allocation20 + $0x8] sm:$0xff]
    %v1295 = vld [vmem:[#allocation20 + $0x10] sm:$0xff]
    %v1296 = vld [vmem:[#allocation20 + $0x18] sm:$0xff]
    %v1297 = vld [vmem:[#allocation20 + $0x20] sm:$0xf]
    %v1299 = vsel %vm242, %v1291, 0
    %v1302 = vsel %vm242, %v1292, 0
    %v1305 = vsel %vm246, %v1297, 0
    %1307 = vmatprep.subr.mxu0 0.0
    %1308 = vmatpush1.msra.mxu0 %v1293
    %1309 = vmatprep.subr.mxu0 0.0
    %1310 = vmatpush1.msra.mxu0 %v1294
    %1311 = vmatprep.subr.mxu0 0.0
    %1312 = vmatpush1.msra.mxu0 %v1295
    %1313 = vmatprep.subr.mxu0 0.0
    %1314 = vmatpush1.msra.mxu0 %v1296
    %1315 = vmatprep.subr.mxu0 0.0
    %1316 = vmatpush1.msra.mxu0 %v1305
    %1317 = vmatprep.subr.mxu0 0.0
    %1318 = vmatpush1.msra.mxu0 0.0
    %1319 = vmatprep.subr.mxu0 0.0
    %1320 = vmatpush1.msra.mxu0 0.0
    %1321 = vmatprep.subr.mxu0 0.0
    %1322 = vmatpush1.msra.mxu0 0.0
    %1323 = vmatprep.subr.mxu0 0.0
    %1324 = vmatpush1.msra.mxu0 0.0
    %1325 = vmatprep.subr.mxu0 0.0
    %1326 = vmatpush1.msra.mxu0 0.0
    %1327 = vmatprep.subr.mxu0 0.0
    %1328 = vmatpush1.msra.mxu0 0.0
    %1329 = vmatprep.subr.mxu0 0.0
    %1330 = vmatpush1.msra.mxu0 0.0
    %1331 = vmatprep.subr.mxu0 0.0
    %1332 = vmatpush1.msra.mxu0 0.0
    %1333 = vmatprep.subr.mxu0 0.0
    %1334 = vmatpush1.msra.mxu0 0.0
    %1335 = vmatprep.subr.mxu0 0.0
    %1336 = vmatpush1.msra.mxu0 0.0
    %1337 = vmatprep.subr.mxu0 0.0
    %1338 = vmatpush1.msra.mxu0 0.0
    %1339 = vmatprep.subr.mxu0 0.0
    %1340 = vmatpush1.msra.mxu0 0.0
    %1341 = vmatprep.subr.mxu0 0.0
    %1342 = vmatpush1.msra.mxu0 0.0
    %1343 = vmatprep.subr.mxu0 0.0
    %1344 = vmatpush1.msra.mxu0 0.0
    %1345 = vmatprep.subr.mxu0 0.0
    %1346 = vmatpush1.msra.mxu0 0.0
    %1347 = vmatprep.subr.mxu0 0.0
    %1348 = vmatpush1.msra.mxu0 0.0
    %1349 = vmatprep.subr.mxu0 0.0
    %1350 = vmatpush1.msra.mxu0 0.0
    %1351 = vmatprep.subr.mxu0 0.0
    %1352 = vmatpush1.msra.mxu0 0.0
    %1353 = vmatprep.subr.mxu0 0.0
    %1354 = vmatpush1.msra.mxu0 0.0
    %1355 = vmatprep.subr.mxu0 0.0
    %1356 = vmatpush1.msra.mxu0 0.0
    %1357 = vmatprep.subr.mxu0 0.0
    %1358 = vmatpush1.msra.mxu0 0.0
    %1359 = vmatprep.subr.mxu0 0.0
    %1360 = vmatpush1.msra.mxu0 0.0
    %1361 = vmatprep.subr.mxu0 0.0
    %1362 = vmatpush1.msra.mxu0 0.0
    %1363 = vmatprep.subr.mxu0 0.0
    %1364 = vmatpush1.msra.mxu0 0.0
    %1365 = vmatprep.subr.mxu0 0.0
    %1366 = vmatpush1.msra.mxu0 0.0
    %1367 = vmatprep.subr.mxu0 0.0
    %1368 = vmatpush1.msra.mxu0 0.0
    %1369 = vmatprep.subr.mxu0 0.0
    %1370 = vmatpush1.msra.mxu0 0.0
    %1371 = vmatprep.mubr.f32.mxu0 0.0
    %1372 = vmatmul.mubr.f32.gmra.mrb[0].mxu0 %v1299
    %v1373 = vpop.f32.mrb[0].mxu0
    %v1374 = vadd.f32 0.0, %v1373
    %v1375 = vpop.f32.mrb[0].mxu0
    %1376 = vmatprep.mubr.f32.mxu0 0.0
    %1377 = vmatmul.mubr.f32.gmra.mrb[0].mxu0 %v1302
    %v1378 = vpop.f32.mrb[0].mxu0
    %v1379 = vadd.f32 0.0, %v1378
    %v1380 = vpop.f32.mrb[0].mxu0
    %1381 = vdwg.mxu0
    %1382 = vrot.lane.b32.xlu0 %v1291, 92
    %v1383 = vpop.permute.xlu0 %1382
    %1384 = vrot.lane.b32.xlu0 %v1292, 92
    %v1385 = vpop.permute.xlu0 %1384
    %v1386 = vsel %vm242, %v1383, 0
    %v1388 = vsel %vm242, %v1385, 0
    %1390 = vmatprep.subr.mxu0 0.0
    %1391 = vmatpush1.msra.mxu0 %v1293
    %1392 = vmatprep.subr.mxu0 0.0
    %1393 = vmatpush1.msra.mxu0 %v1294
    %1394 = vmatprep.subr.mxu0 0.0
    %1395 = vmatpush1.msra.mxu0 %v1295
    %1396 = vmatprep.subr.mxu0 0.0
    %1397 = vmatpush1.msra.mxu0 %v1296
    %1398 = vmatprep.subr.mxu0 0.0
    %1399 = vmatpush1.msra.mxu0 %v1305
    %1400 = vmatprep.subr.mxu0 0.0
    %1401 = vmatpush1.msra.mxu0 0.0
    %1402 = vmatprep.subr.mxu0 0.0
    %1403 = vmatpush1.msra.mxu0 0.0
    %1404 = vmatprep.subr.mxu0 0.0
    %1405 = vmatpush1.msra.mxu0 0.0
    %1406 = vmatprep.subr.mxu0 0.0
    %1407 = vmatpush1.msra.mxu0 0.0
    %1408 = vmatprep.subr.mxu0 0.0
    %1409 = vmatpush1.msra.mxu0 0.0
    %1410 = vmatprep.subr.mxu0 0.0
    %1411 = vmatpush1.msra.mxu0 0.0
    %1412 = vmatprep.subr.mxu0 0.0
    %1413 = vmatpush1.msra.mxu0 0.0
    %1414 = vmatprep.subr.mxu0 0.0
    %1415 = vmatpush1.msra.mxu0 0.0
    %1416 = vmatprep.subr.mxu0 0.0
    %1417 = vmatpush1.msra.mxu0 0.0
    %1418 = vmatprep.subr.mxu0 0.0
    %1419 = vmatpush1.msra.mxu0 0.0
    %1420 = vmatprep.subr.mxu0 0.0
    %1421 = vmatpush1.msra.mxu0 0.0
    %1422 = vmatprep.subr.mxu0 0.0
    %1423 = vmatpush1.msra.mxu0 0.0
    %1424 = vmatprep.subr.mxu0 0.0
    %1425 = vmatpush1.msra.mxu0 0.0
    %1426 = vmatprep.subr.mxu0 0.0
    %1427 = vmatpush1.msra.mxu0 0.0
    %1428 = vmatprep.subr.mxu0 0.0
    %1429 = vmatpush1.msra.mxu0 0.0
    %1430 = vmatprep.subr.mxu0 0.0
    %1431 = vmatpush1.msra.mxu0 0.0
    %1432 = vmatprep.subr.mxu0 0.0
    %1433 = vmatpush1.msra.mxu0 0.0
    %1434 = vmatprep.subr.mxu0 0.0
    %1435 = vmatpush1.msra.mxu0 0.0
    %1436 = vmatprep.subr.mxu0 0.0
    %1437 = vmatpush1.msra.mxu0 0.0
    %1438 = vmatprep.subr.mxu0 0.0
    %1439 = vmatpush1.msra.mxu0 0.0
    %1440 = vmatprep.subr.mxu0 0.0
    %1441 = vmatpush1.msra.mxu0 0.0
    %1442 = vmatprep.subr.mxu0 0.0
    %1443 = vmatpush1.msra.mxu0 0.0
    %1444 = vmatprep.subr.mxu0 0.0
    %1445 = vmatpush1.msra.mxu0 0.0
    %1446 = vmatprep.subr.mxu0 0.0
    %1447 = vmatpush1.msra.mxu0 0.0
    %1448 = vmatprep.subr.mxu0 0.0
    %1449 = vmatpush1.msra.mxu0 0.0
    %1450 = vmatprep.subr.mxu0 0.0
    %1451 = vmatpush1.msra.mxu0 0.0
    %1452 = vmatprep.subr.mxu0 0.0
    %1453 = vmatpush1.msra.mxu0 0.0
    %1454 = vmatprep.mubr.f32.mxu0 0.0
    %1455 = vmatmul.mubr.f32.gmra.mrb[0].mxu0 %v1386
    %v1456 = vpop.f32.mrb[0].mxu0
    %v1457 = vadd.f32 0.0, %v1456
    %v1458 = vpop.f32.mrb[0].mxu0
    %1459 = vmatprep.mubr.f32.mxu0 0.0
    %1460 = vmatmul.mubr.f32.gmra.mrb[0].mxu0 %v1388
    %v1461 = vpop.f32.mrb[0].mxu0
    %v1462 = vadd.f32 0.0, %v1461
    %v1463 = vpop.f32.mrb[0].mxu0
    %1464 = vdwg.mxu0
    %1467 = vrot.lane.b32.xlu0 %v1457, 1
    %v1468 = vpop.permute.xlu0 %1467
    %1469 = vrot.lane.b32.xlu0 %v1462, 1
    %v1470 = vpop.permute.xlu0 %1469
    %vm1473 = vcmask 7168
    %v1474 = vsel %vm1473, %v1374, %v1468
    %v1475 = vsel %vm1473, %v1379, %v1470
    %v1476 = vld [vmem:[#allocation22] sm:$0xff]
    %v1477 = vld [vmem:[#allocation22 + $0x8] sm:$0xff]
    %v1478 = vld [vmem:[#allocation22 + $0x10] sm:$0xff]
    %v1479 = vld [vmem:[#allocation22 + $0x18] sm:$0xff]
    %v1480 = vld [vmem:[#allocation22 + $0x20] sm:$0xff]
    %v1481 = vld [vmem:[#allocation22 + $0x28] sm:$0xff]
    %v1482 = vld [vmem:[#allocation22 + $0x30] sm:$0xff]
    %v1483 = vld [vmem:[#allocation22 + $0x38] sm:$0xff]
    %v1484 = vld [vmem:[#allocation22 + $0x40] sm:$0xff]
    %v1485 = vld [vmem:[#allocation22 + $0x48] sm:$0xff]
    %v1486 = vld [vmem:[#allocation22 + $0x50] sm:$0xff]
    %v1487 = vld [vmem:[#allocation22 + $0x58] sm:$0xff]
    %v1488 = vld [vmem:[#allocation22 + $0x60] sm:$0xff]
    %v1489 = vld [vmem:[#allocation22 + $0x68] sm:$0xff]
    %v1490 = vld [vmem:[#allocation22 + $0x70] sm:$0xff]
    %v1491 = vld [vmem:[#allocation22 + $0x78] sm:$0xff]
    %v1492 = vld [vmem:[#allocation23] sm:$0xff]
    %v1493 = vld [vmem:[#allocation23 + $0x8] sm:$0xff]
    %v1494 = vld [vmem:[#allocation23 + $0x10] sm:$0xff]
    %v1495 = vld [vmem:[#allocation23 + $0x18] sm:$0xff]
    %v1496 = vld [vmem:[#allocation23 + $0x20] sm:$0xff]
    %v1497 = vld [vmem:[#allocation23 + $0x28] sm:$0xff]
    %v1498 = vld [vmem:[#allocation23 + $0x30] sm:$0xff]
    %v1499 = vld [vmem:[#allocation23 + $0x38] sm:$0xff]
    %v1500 = vld [vmem:[#allocation23 + $0x40] sm:$0xff]
    %v1501 = vld [vmem:[#allocation23 + $0x48] sm:$0xff]
    %v1502 = vld [vmem:[#allocation23 + $0x50] sm:$0xff]
    %v1503 = vld [vmem:[#allocation23 + $0x58] sm:$0xff]
    %v1504 = vld [vmem:[#allocation23 + $0x60] sm:$0xff]
    %v1505 = vld [vmem:[#allocation23 + $0x68] sm:$0xff]
    %v1506 = vld [vmem:[#allocation23 + $0x70] sm:$0xff]
    %v1507 = vld [vmem:[#allocation23 + $0x78] sm:$0xff]
    %1509 = vset.pattern.permute.xlu0 0
    %1510 = vperm.xlu0 %1509, %v1492
    %v1511 = vpop.permute.xlu0 %1510
    %1514 = vset.pattern.permute.xlu0 0
    %1515 = vperm.xlu0 %1514, %v1493
    %v1516 = vpop.permute.xlu0 %1515
    %1519 = vset.pattern.permute.xlu0 0
    %1520 = vperm.xlu0 %1519, %v1494
    %v1521 = vpop.permute.xlu0 %1520
    %1524 = vset.pattern.permute.xlu0 0
    %1525 = vperm.xlu0 %1524, %v1495
    %v1526 = vpop.permute.xlu0 %1525
    %1529 = vset.pattern.permute.xlu0 0
    %1530 = vperm.xlu0 %1529, %v1496
    %v1531 = vpop.permute.xlu0 %1530
    %1534 = vset.pattern.permute.xlu0 0
    %1535 = vperm.xlu0 %1534, %v1497
    %v1536 = vpop.permute.xlu0 %1535
    %1539 = vset.pattern.permute.xlu0 0
    %1540 = vperm.xlu0 %1539, %v1498
    %v1541 = vpop.permute.xlu0 %1540
    %1544 = vset.pattern.permute.xlu0 0
    %1545 = vperm.xlu0 %1544, %v1499
    %v1546 = vpop.permute.xlu0 %1545
    %1549 = vset.pattern.permute.xlu0 0
    %1550 = vperm.xlu0 %1549, %v1500
    %v1551 = vpop.permute.xlu0 %1550
    %1554 = vset.pattern.permute.xlu0 0
    %1555 = vperm.xlu0 %1554, %v1501
    %v1556 = vpop.permute.xlu0 %1555
    %1559 = vset.pattern.permute.xlu0 0
    %1560 = vperm.xlu0 %1559, %v1502
    %v1561 = vpop.permute.xlu0 %1560
    %1564 = vset.pattern.permute.xlu0 0
    %1565 = vperm.xlu0 %1564, %v1503
    %v1566 = vpop.permute.xlu0 %1565
    %1569 = vset.pattern.permute.xlu0 0
    %1570 = vperm.xlu0 %1569, %v1504
    %v1571 = vpop.permute.xlu0 %1570
    %1574 = vset.pattern.permute.xlu0 0
    %1575 = vperm.xlu0 %1574, %v1505
    %v1576 = vpop.permute.xlu0 %1575
    %1579 = vset.pattern.permute.xlu0 0
    %1580 = vperm.xlu0 %1579, %v1506
    %v1581 = vpop.permute.xlu0 %1580
    %1584 = vset.pattern.permute.xlu0 0
    %1585 = vperm.xlu0 %1584, %v1507
    %v1586 = vpop.permute.xlu0 %1585
    %v1589 = vsel %vm458, %v1476, 0
    %v1592 = vsel %vm458, %v1477, 0
    %v1595 = vsel %vm458, %v1478, 0
    %v1598 = vsel %vm458, %v1479, 0
    %v1601 = vsel %vm458, %v1480, 0
    %v1604 = vsel %vm458, %v1481, 0
    %v1607 = vsel %vm458, %v1482, 0
    %v1610 = vsel %vm458, %v1483, 0
    %v1613 = vsel %vm458, %v1484, 0
    %v1616 = vsel %vm458, %v1485, 0
    %v1619 = vsel %vm458, %v1486, 0
    %v1622 = vsel %vm458, %v1487, 0
    %v1625 = vsel %vm458, %v1488, 0
    %v1628 = vsel %vm458, %v1489, 0
    %v1631 = vsel %vm458, %v1490, 0
    %v1634 = vsel %vm458, %v1491, 0
    %1636 = vmatprep.subr.mxu0 0.0
    %1637 = vmatpush1.msra.mxu0 %v1474
    %1638 = vmatprep.subr.mxu0 0.0
    %1639 = vmatpush1.msra.mxu0 %v1475
    %1640 = vmatprep.subr.mxu0 0.0
    %1641 = vmatpush1.msra.mxu0 0.0
    %1642 = vmatprep.subr.mxu0 0.0
    %1643 = vmatpush1.msra.mxu0 0.0
    %1644 = vmatprep.subr.mxu0 0.0
    %1645 = vmatpush1.msra.mxu0 0.0
    %1646 = vmatprep.subr.mxu0 0.0
    %1647 = vmatpush1.msra.mxu0 0.0
    %1648 = vmatprep.subr.mxu0 0.0
    %1649 = vmatpush1.msra.mxu0 0.0
    %1650 = vmatprep.subr.mxu0 0.0
    %1651 = vmatpush1.msra.mxu0 0.0
    %1652 = vmatprep.subr.mxu0 0.0
    %1653 = vmatpush1.msra.mxu0 0.0
    %1654 = vmatprep.subr.mxu0 0.0
    %1655 = vmatpush1.msra.mxu0 0.0
    %1656 = vmatprep.subr.mxu0 0.0
    %1657 = vmatpush1.msra.mxu0 0.0
    %1658 = vmatprep.subr.mxu0 0.0
    %1659 = vmatpush1.msra.mxu0 0.0
    %1660 = vmatprep.subr.mxu0 0.0
    %1661 = vmatpush1.msra.mxu0 0.0
    %1662 = vmatprep.subr.mxu0 0.0
    %1663 = vmatpush1.msra.mxu0 0.0
    %1664 = vmatprep.subr.mxu0 0.0
    %1665 = vmatpush1.msra.mxu0 0.0
    %1666 = vmatprep.subr.mxu0 0.0
    %1667 = vmatpush1.msra.mxu0 0.0
    %1668 = vmatprep.subr.mxu0 0.0
    %1669 = vmatpush1.msra.mxu0 0.0
    %1670 = vmatprep.subr.mxu0 0.0
    %1671 = vmatpush1.msra.mxu0 0.0
    %1672 = vmatprep.subr.mxu0 0.0
    %1673 = vmatpush1.msra.mxu0 0.0
    %1674 = vmatprep.subr.mxu0 0.0
    %1675 = vmatpush1.msra.mxu0 0.0
    %1676 = vmatprep.subr.mxu0 0.0
    %1677 = vmatpush1.msra.mxu0 0.0
    %1678 = vmatprep.subr.mxu0 0.0
    %1679 = vmatpush1.msra.mxu0 0.0
    %1680 = vmatprep.subr.mxu0 0.0
    %1681 = vmatpush1.msra.mxu0 0.0
    %1682 = vmatprep.subr.mxu0 0.0
    %1683 = vmatpush1.msra.mxu0 0.0
    %1684 = vmatprep.subr.mxu0 0.0
    %1685 = vmatpush1.msra.mxu0 0.0
    %1686 = vmatprep.subr.mxu0 0.0
    %1687 = vmatpush1.msra.mxu0 0.0
    %1688 = vmatprep.subr.mxu0 0.0
    %1689 = vmatpush1.msra.mxu0 0.0
    %1690 = vmatprep.subr.mxu0 0.0
    %1691 = vmatpush1.msra.mxu0 0.0
    %1692 = vmatprep.subr.mxu0 0.0
    %1693 = vmatpush1.msra.mxu0 0.0
    %1694 = vmatprep.subr.mxu0 0.0
    %1695 = vmatpush1.msra.mxu0 0.0
    %1696 = vmatprep.subr.mxu0 0.0
    %1697 = vmatpush1.msra.mxu0 0.0
    %1698 = vmatprep.subr.mxu0 0.0
    %1699 = vmatpush1.msra.mxu0 0.0
    %1700 = vmatprep.mubr.f32.mxu0 0.0
    %1701 = vmatmul.mubr.f32.gmra.mrb[0].mxu0 %v1589
    %v1702 = vpop.f32.mrb[0].mxu0
    %v1703 = vadd.f32 %v1511, %v1702
    %v1704 = vpop.f32.mrb[0].mxu0
    %1705 = vmatprep.mubr.f32.mxu0 0.0
    %1706 = vmatmul.mubr.f32.gmra.mrb[0].mxu0 %v1592
    %v1707 = vpop.f32.mrb[0].mxu0
    %v1708 = vadd.f32 %v1516, %v1707
    %v1709 = vpop.f32.mrb[0].mxu0
    %1710 = vmatprep.mubr.f32.mxu0 0.0
    %1711 = vmatmul.mubr.f32.gmra.mrb[0].mxu0 %v1595
    %v1712 = vpop.f32.mrb[0].mxu0
    %v1713 = vadd.f32 %v1521, %v1712
    %v1714 = vpop.f32.mrb[0].mxu0
    %1715 = vmatprep.mubr.f32.mxu0 0.0
    %1716 = vmatmul.mubr.f32.gmra.mrb[0].mxu0 %v1598
    %v1717 = vpop.f32.mrb[0].mxu0
    %v1718 = vadd.f32 %v1526, %v1717
    %v1719 = vpop.f32.mrb[0].mxu0
    %1720 = vmatprep.mubr.f32.mxu0 0.0
    %1721 = vmatmul.mubr.f32.gmra.mrb[0].mxu0 %v1601
    %v1722 = vpop.f32.mrb[0].mxu0
    %v1723 = vadd.f32 %v1531, %v1722
    %v1724 = vpop.f32.mrb[0].mxu0
    %1725 = vmatprep.mubr.f32.mxu0 0.0
    %1726 = vmatmul.mubr.f32.gmra.mrb[0].mxu0 %v1604
    %v1727 = vpop.f32.mrb[0].mxu0
    %v1728 = vadd.f32 %v1536, %v1727
    %v1729 = vpop.f32.mrb[0].mxu0
    %1730 = vmatprep.mubr.f32.mxu0 0.0
    %1731 = vmatmul.mubr.f32.gmra.mrb[0].mxu0 %v1607
    %v1732 = vpop.f32.mrb[0].mxu0
    %v1733 = vadd.f32 %v1541, %v1732
    %v1734 = vpop.f32.mrb[0].mxu0
    %1735 = vmatprep.mubr.f32.mxu0 0.0
    %1736 = vmatmul.mubr.f32.gmra.mrb[0].mxu0 %v1610
    %v1737 = vpop.f32.mrb[0].mxu0
    %v1738 = vadd.f32 %v1546, %v1737
    %v1739 = vpop.f32.mrb[0].mxu0
    %1740 = vmatprep.mubr.f32.mxu0 0.0
    %1741 = vmatmul.mubr.f32.gmra.mrb[0].mxu0 %v1613
    %v1742 = vpop.f32.mrb[0].mxu0
    %v1743 = vadd.f32 %v1551, %v1742
    %v1744 = vpop.f32.mrb[0].mxu0
    %1745 = vmatprep.mubr.f32.mxu0 0.0
    %1746 = vmatmul.mubr.f32.gmra.mrb[0].mxu0 %v1616
    %v1747 = vpop.f32.mrb[0].mxu0
    %v1748 = vadd.f32 %v1556, %v1747
    %v1749 = vpop.f32.mrb[0].mxu0
    %1750 = vmatprep.mubr.f32.mxu0 0.0
    %1751 = vmatmul.mubr.f32.gmra.mrb[0].mxu0 %v1619
    %v1752 = vpop.f32.mrb[0].mxu0
    %v1753 = vadd.f32 %v1561, %v1752
    %v1754 = vpop.f32.mrb[0].mxu0
    %1755 = vmatprep.mubr.f32.mxu0 0.0
    %1756 = vmatmul.mubr.f32.gmra.mrb[0].mxu0 %v1622
    %v1757 = vpop.f32.mrb[0].mxu0
    %v1758 = vadd.f32 %v1566, %v1757
    %v1759 = vpop.f32.mrb[0].mxu0
    %1760 = vmatprep.mubr.f32.mxu0 0.0
    %1761 = vmatmul.mubr.f32.gmra.mrb[0].mxu0 %v1625
    %v1762 = vpop.f32.mrb[0].mxu0
    %v1763 = vadd.f32 %v1571, %v1762
    %v1764 = vpop.f32.mrb[0].mxu0
    %1765 = vmatprep.mubr.f32.mxu0 0.0
    %1766 = vmatmul.mubr.f32.gmra.mrb[0].mxu0 %v1628
    %v1767 = vpop.f32.mrb[0].mxu0
    %v1768 = vadd.f32 %v1576, %v1767
    %v1769 = vpop.f32.mrb[0].mxu0
    %1770 = vmatprep.mubr.f32.mxu0 0.0
    %1771 = vmatmul.mubr.f32.gmra.mrb[0].mxu0 %v1631
    %v1772 = vpop.f32.mrb[0].mxu0
    %v1773 = vadd.f32 %v1581, %v1772
    %v1774 = vpop.f32.mrb[0].mxu0
    %1775 = vmatprep.mubr.f32.mxu0 0.0
    %1776 = vmatmul.mubr.f32.gmra.mrb[0].mxu0 %v1634
    %v1777 = vpop.f32.mrb[0].mxu0
    %v1778 = vadd.f32 %v1586, %v1777
    %v1779 = vpop.f32.mrb[0].mxu0
    %1780 = vdwg.mxu0
    %vm1781 = vcmask 15360
    %1782 = vst.msk [vmem:[#allocation25] sm:$0xff] %vm1781, %v1703
    %1783 = vst.msk [vmem:[#allocation25 + $0x8] sm:$0xff] %vm1781, %v1708
    %1784 = vst.msk [vmem:[#allocation25 + $0x10] sm:$0xff] %vm1781, %v1713
    %1785 = vst.msk [vmem:[#allocation25 + $0x18] sm:$0xff] %vm1781, %v1718
    %1786 = vst.msk [vmem:[#allocation25 + $0x20] sm:$0xff] %vm1781, %v1723
    %1787 = vst.msk [vmem:[#allocation25 + $0x28] sm:$0xff] %vm1781, %v1728
    %1788 = vst.msk [vmem:[#allocation25 + $0x30] sm:$0xff] %vm1781, %v1733
    %1789 = vst.msk [vmem:[#allocation25 + $0x38] sm:$0xff] %vm1781, %v1738
    %1790 = vst.msk [vmem:[#allocation25 + $0x40] sm:$0xff] %vm1781, %v1743
    %1791 = vst.msk [vmem:[#allocation25 + $0x48] sm:$0xff] %vm1781, %v1748
    %1792 = vst.msk [vmem:[#allocation25 + $0x50] sm:$0xff] %vm1781, %v1753
    %1793 = vst.msk [vmem:[#allocation25 + $0x58] sm:$0xff] %vm1781, %v1758
    %1794 = vst.msk [vmem:[#allocation25 + $0x60] sm:$0xff] %vm1781, %v1763
    %1795 = vst.msk [vmem:[#allocation25 + $0x68] sm:$0xff] %vm1781, %v1768
    %1796 = vst.msk [vmem:[#allocation25 + $0x70] sm:$0xff] %vm1781, %v1773
    %1797 = vst.msk [vmem:[#allocation25 + $0x78] sm:$0xff] %vm1781, %v1778
    // Predicated region
    $region114: #{tpu_custom_call.1} parent=1 // pred_check
      _
    $region115: #{tpu_custom_call.1} parent=1 // pred_check_branch
      %1799 = sbr.rel (0) target = $region117
    $region116: #{tpu_custom_call.1} parent=1 // pred_region
      %s1801 = ssub.s32 2048, 2048
      %1802 = vsyncadd [#allocation4], %s1801
      %s1803 = sshll.u32 [#allocation25], 4
      %s1804 = int_to_ptr.vmem [resolvable:$true] %s1803
      %1809 = dma.vmem_to_hbm [thread:$0]  %s1804, 2048, %s14, [#allocation4], 128, 128, 8
    $region117: #{tpu_custom_call.1} parent=1 // pred_fallthru
      _
    // Predicated region
    $region118: #{tpu_custom_call.1} parent=1 // pred_check
      _
    $region119: #{tpu_custom_call.1} parent=1 // pred_check_branch
      %1811 = sbr.rel (0) target = $region121
    $region120: #{tpu_custom_call.1} parent=1 // pred_region
      %1812 = dma.done [#allocation4], 2048
    $region121: #{tpu_custom_call.1} parent=1 // pred_fallthru
      _
    %1813 = vsyncpa [#allocation3], 1
    %1814 = vsyncpa [#allocation6], 1
    %1815 = vsyncpa [#allocation9], 1
    %1816 = vsyncpa [#allocation12], 1
    %1817 = vsyncpa [#allocation15], 1
    %1818 = vsyncpa [#allocation18], 1
    %1819 = vsyncpa [#allocation21], 1
    %1820 = vsyncpa [#allocation24], 1
    %1821 = vsyncpa [#allocation4], 1

</llo_original>
